<compile_context>
chip_gen: v5e
topology: v5e:2x2
jax: 0.10.0
libtpu: 0.0.40
codegen_flags: <defaults>
</compile_context>

<pallas_src>
import math
import numpy as np

import jax
import jax.numpy as jnp
from jax.experimental import pallas as pl
from jax.experimental.pallas import tpu as pltpu

BN_EPS = 1e-5


# --------------------------------------------------------------------------- #
# Host-side (trace-time) construction of dense linear operators.               #
# --------------------------------------------------------------------------- #
def _bicubic_matrix(out_size, in_size):
    """PyTorch F.interpolate(mode='bicubic', align_corners=False), A=-0.75."""
    A = -0.75
    scale = in_size / out_size

    def cc1(t):   # |x| <= 1
        return ((A + 2.0) * t - (A + 3.0)) * t * t + 1.0

    def cc2(t):   # 1 < |x| < 2
        return ((A * t - 5.0 * A) * t + 8.0 * A) * t - 4.0 * A

    M = np.zeros((out_size, in_size), dtype=np.float32)
    for o in range(out_size):
        real = scale * (o + 0.5) - 0.5
        i0 = int(math.floor(real))
        t = real - i0
        cs = (cc2(t + 1.0), cc1(t), cc1(1.0 - t), cc2(2.0 - t))
        for k in range(4):
            idx = min(max(i0 - 1 + k, 0), in_size - 1)   # border clamp, as PyTorch
            M[o, idx] += cs[k]
    return M


def _nearest_down_matrix(out_size, in_size):
    """F.interpolate(mode='nearest', scale 1/sf): src = floor(dst * in/out)."""
    M = np.zeros((out_size, in_size), dtype=np.float32)
    src = (np.arange(out_size) * in_size) // out_size
    M[np.arange(out_size), src] = 1.0
    return M


def _conv_same_toeplitz_T(w, H, W):
    """Dense operator of a stride-1, zero-padded 'same' cross-correlation
    (nn.Conv2d semantics, bias=False) in right-multiply form:

        out_rows (N, Cout*H*W) = in_rows (N, Cin*H*W) @ M_T

    Returns M_T of shape (Cin*H*W, Cout*H*W); row-major (c, h, w) flattening.
    """
    Cout, Cin, K, _ = w.shape
    P = (K - 1) // 2
    M = np.zeros((Cout * H * W, Cin * H * W), dtype=np.float32)
    cols_w = np.arange(W)
    for co in range(Cout):
        for ci in range(Cin):
            for ky in range(K):
                dy = ky - P
                for kx in range(K):
                    dx = kx - P
                    wv = float(w[co, ci, ky, kx])
                    iw = cols_w + dx
                    valid = (iw >= 0) & (iw < W)
                    if not valid.any():
                        continue
                    for h in range(H):
                        ih = h + dy
                        if ih < 0 or ih >= H:
                            continue
                        rows = co * H * W + h * W + cols_w[valid]
                        cols = ci * H * W + ih * W + iw[valid]
                        M[rows, cols] += wv
    return np.ascontiguousarray(M.T)


# --------------------------------------------------------------------------- #
# In-kernel helpers.                                                           #
# --------------------------------------------------------------------------- #
def _bn_stats(x, count):
    """One-pass BatchNorm2d(1, affine=False) training statistics.

    Returns (mean, rsqrt(var + eps)) as (1, 1) tiles.  `count` is the number of
    *real* elements: any zero-padded lanes contribute exactly 0 to both sums, so
    they do not perturb the statistics.
    """
    s = jnp.sum(jnp.sum(x, axis=1, keepdims=True), axis=0, keepdims=True)
    ss = jnp.sum(jnp.sum(x * x, axis=1, keepdims=True), axis=0, keepdims=True)
    inv = 1.0 / count
    m = s * inv
    v = jnp.maximum(ss * inv - m * m, 0.0)     # guard tiny cancellation negatives
    return m, jax.lax.rsqrt(v + BN_EPS)


def _lista_decode(lista_folds, y, weT, wdT, th):
    # TODO(synk): `raw_decoder` source was not provided; implemented as a canonical
    # LISTA/ISTA unfolding (analysis conv -> per-channel soft threshold folds ->
    # synthesis conv) matching the (lista_folds, kernel_size) signature.
    n = y.shape[0]
    p = weT.shape[1]
    bf = jnp.bfloat16
    # Hoist & materialize the threshold broadcast once (JAX does not CSE it).
    thb = jnp.broadcast_to(th, (n, p))
    nthb = -thb

    def soft(s):                                   # s - clip(s, -th, th)
        return s - jnp.clip(s, nthb, thb)

    z = soft(jnp.dot(y.astype(bf), weT, preferred_element_type=jnp.float32))
    for _ in range(lista_folds - 1):
        r = y - jnp.dot(z.astype(bf), wdT, preferred_element_type=jnp.float32)
        z = soft(z + jnp.dot(r.astype(bf), weT, preferred_element_type=jnp.float32))
    return jnp.dot(z.astype(bf), wdT, preferred_element_type=jnp.float32)


def _make_full_kernel(lista_folds, n_enc_real):
    """encoder + decoder path (decoder_only=False)."""
    def kernel(x_ref, dwT_ref, duT_ref, cs_ref, weT_ref, wdT_ref, th_ref,
               enc_ref, dec_ref):
        n = x_ref.shape[0]
        xb = x_ref[...].astype(jnp.bfloat16)
        # Two INDEPENDENT lane-dense K = H*W matmuls (MXU):
        #   enc_raw = nearest-downsample(x)   (128-lane padded output slab)
        #   up_raw  = bicubic_up(nearest_down(x))   (fused operator DU_T)
        enc_raw = jnp.dot(xb, dwT_ref[...], preferred_element_type=jnp.float32)
        up_raw = jnp.dot(xb, duT_ref[...], preferred_element_type=jnp.float32)

        # BN1 (training-mode batch stats over the n_enc_real real lanes; padded
        # lanes of enc_raw are exact zeros so the one-pass sums are unaffected).
        m1, s1 = _bn_stats(enc_raw, float(n * n_enc_real))
        enc_ref[...] = (enc_raw - m1) * s1

        # BN1 folded linearly into the upsample branch:
        #   up(bn1(enc)) = s1 * up(enc) - s1 * m1 * up(ones)
        up1 = s1 * up_raw - (m1 * s1) * cs_ref[...]

        # BN2 (all lanes real).
        m2, s2 = _bn_stats(up1, float(up1.shape[0] * up1.shape[1]))
        y = (up1 - m2) * s2

        dec_ref[...] = _lista_decode(lista_folds, y, weT_ref[...], wdT_ref[...],
                                     th_ref[...])
    return kernel


def _make_decoder_only_kernel(lista_folds):
    def kernel(x_ref, upT_ref, weT_ref, wdT_ref, th_ref, dec_ref):
        xb = x_ref[...].astype(jnp.bfloat16)
        up = jnp.dot(xb, upT_ref[...], preferred_element_type=jnp.float32)
        m2, s2 = _bn_stats(up, float(up.shape[0] * up.shape[1]))
        y = (up - m2) * s2
        dec_ref[...] = _lista_decode(lista_folds, y, weT_ref[...], wdT_ref[...],
                                     th_ref[...])
    return kernel


# --------------------------------------------------------------------------- #
# EncoderDecoder module                                                         #
# --------------------------------------------------------------------------- #
class EncoderDecoderPallas:
    """Pallas port of `EncoderDecoder` (decoder implemented as LISTA unfolding)."""

    def __init__(self, lista_folds=2, kernel_size=7, scale_factor=4,
                 num_filters=4, key=None):
        key = jax.random.PRNGKey(0) if key is None else key
        k1, k2, k3 = jax.random.split(key, 3)
        fan_e = 1 * kernel_size * kernel_size
        fan_d = num_filters * kernel_size * kernel_size
        # Deterministic synthetic weights (kaiming-like scaling).
        self.We = jax.random.normal(
            k1, (num_filters, 1, kernel_size, kernel_size), jnp.float32) / math.sqrt(fan_e)
        self.Wd = jax.random.normal(
            k2, (1, num_filters, kernel_size, kernel_size), jnp.float32) / math.sqrt(fan_d)
        self.theta = 0.05 + 0.01 * jnp.abs(
            jax.random.normal(k3, (num_filters,), jnp.float32))
        self.lista_folds = lista_folds
        self.kernel_size = kernel_size
        self.scale_factor = scale_factor
        self.num_filters = num_filters
        self._op_cache = {}   # (Hs, Ws) -> dense operators, built once per shape

    # -- host-side dense operators (bf16 for the MXU, f32 for scalar constants) --
    def _operators(self, Hs, Ws):
        key = (Hs, Ws)
        if key not in self._op_cache:
            sf = self.scale_factor
            H, W = Hs * sf, Ws * sf
            # D: (Hs*Ws, H*W) nearest-selection, U: (H*W, Hs*Ws) bicubic upsample.
            D = np.kron(_nearest_down_matrix(Hs, H), _nearest_down_matrix(Ws, W))
            U = np.kron(_bicubic_matrix(H, Hs), _bicubic_matrix(W, Ws))
            enc_lanes = int(-(-(Hs * Ws) // 128) * 128)      # lane-dense enc slab
            down_T_pad = np.zeros((H * W, enc_lanes), np.float32)
            down_T_pad[:, :Hs * Ws] = D.T
            DU_T = np.ascontiguousarray((U @ D).T)           # x @ DU_T = up(down(x))
            cs = U.sum(axis=1)[None, :].astype(np.float32)   # up(ones), (1, H*W)
            up_T = np.ascontiguousarray(U.T)                 # (Hs*Ws, H*W)
            we_T = _conv_same_toeplitz_T(np.asarray(self.We), H, W)  # (H*W, F*H*W)
            wd_T = _conv_same_toeplitz_T(np.asarray(self.Wd), H, W)  # (F*H*W, H*W)
            th = np.repeat(np.asarray(self.theta, np.float32), H * W)[None, :]
            self._op_cache[key] = (
                jnp.asarray(down_T_pad, jnp.bfloat16),
                jnp.asarray(DU_T, jnp.bfloat16),
                jnp.asarray(cs, jnp.float32),
                jnp.asarray(up_T, jnp.bfloat16),
                jnp.asarray(we_T, jnp.bfloat16),
                jnp.asarray(wd_T, jnp.bfloat16),
                jnp.asarray(th, jnp.float32),
            )
        return self._op_cache[key]

    @staticmethod
    def _compiler_params(args, out_bytes):
        in_bytes = sum(int(np.prod(a.shape)) * a.dtype.itemsize for a in args)
        # whole working set is VMEM-resident (no grid); 2x for I/O buffering + headroom.
        need = 2 * (in_bytes + out_bytes) + (4 << 20)
        return pltpu.CompilerParams(
            vmem_limit_bytes=int(min(max(need, 16 << 20), 128 << 20)))

    def __call__(self, x, decoder_only=False):
        N, C, H, W = x.shape
        assert C == 1, "module uses BatchNorm2d(1): single-channel input expected"
        sf = self.scale_factor
        if decoder_only:
            Hs, Ws = H, W
        else:
            assert H % sf == 0 and W % sf == 0
            Hs, Ws = H // sf, W // sf
        Ho, Wo = Hs * sf, Ws * sf
        down_T_pad, DU_T, cs, up_T, we_T, wd_T, th = self._operators(Hs, Ws)

        x2d = x.reshape(N, -1).astype(jnp.float32)   # lane-dense activation rows

        if decoder_only:
            args = (x2d, up_T, we_T, wd_T, th)
            dec_shape = jax.ShapeDtypeStruct((N, Ho * Wo), jnp.float32)
            dec2d = pl.pallas_call(
                _make_decoder_only_kernel(self.lista_folds),
                out_shape=dec_shape,
                compiler_params=self._compiler_params(args, N * Ho * Wo * 4),
            )(*args)
            enc = x.astype(jnp.float32)              # encoder_output = x.float()
            return enc, dec2d.reshape(N, 1, Ho, Wo)

        enc_lanes = down_T_pad.shape[1]
        args = (x2d, down_T_pad, DU_T, cs, we_T, wd_T, th)
        out_shape = (jax.ShapeDtypeStruct((N, enc_lanes), jnp.float32),
                     jax.ShapeDtypeStruct((N, Ho * Wo), jnp.float32))
        out_bytes = N * (enc_lanes + Ho * Wo) * 4
        enc2d, dec2d = pl.pallas_call(
            _make_full_kernel(self.lista_folds, Hs * Ws),
            out_shape=out_shape,
            compiler_params=self._compiler_params(args, out_bytes),
        )(*args)
        enc = enc2d[:, :Hs * Ws].reshape(N, 1, Hs, Ws)
        return enc, dec2d.reshape(N, 1, Ho, Wo)


# --------------------------------------------------------------------------- #
# Pure-JAX (XLA) reference of the same semantics, for numerical validation.    #
# --------------------------------------------------------------------------- #
def _reference_forward(model, x, decoder_only=False):
    sf = model.scale_factor
    xf = x.astype(jnp.float32)
    if decoder_only:
        enc = xf
    else:
        enc = xf[:, :, ::sf, ::sf]
        m = jnp.mean(enc)
        v = jnp.mean((enc - m) ** 2)
        enc = (enc - m) * jax.lax.rsqrt(v + BN_EPS)
    Hs, Ws = enc.shape[2], enc.shape[3]
    Kh = jnp.asarray(_bicubic_matrix(Hs * sf, Hs))
    Kw = jnp.asarray(_bicubic_matrix(Ws * sf, Ws))
    up = jnp.einsum('oh,nchw,pw->ncop', Kh, enc, Kw,
                    precision=jax.lax.Precision.HIGHEST)
    m = jnp.mean(up)
    v = jnp.mean((up - m) ** 2)
    up = (up - m) * jax.lax.rsqrt(v + BN_EPS)

    dn = ('NCHW', 'OIHW', 'NCHW')
    conv = lambda a, wt: jax.lax.conv_general_dilated(
        a, wt, (1, 1), 'SAME', dimension_numbers=dn,
        precision=jax.lax.Precision.HIGHEST)
    th = model.theta[None, :, None, None]
    soft = lambda s: jnp.maximum(s - th, 0.0) - jnp.maximum(-s - th, 0.0)
    z = soft(conv(up, model.We))
    for _ in range(model.lista_folds - 1):
        r = up - conv(z, model.Wd)
        z = soft(z + conv(r, model.We))
    dec = conv(z, model.Wd)
    return enc, dec


if __name__ == "__main__":
    key = jax.random.PRNGKey(0)
    x = jax.random.normal(key, (2, 1, 16, 16), jnp.float32)   # NCHW

    model = EncoderDecoderPallas(lista_folds=2, kernel_size=7,
                                 scale_factor=4, num_filters=4)

    enc, dec = model(x, decoder_only=False)
    jax.block_until_ready(enc)
    jax.block_until_ready(dec)
    assert enc.shape == (2, 1, 4, 4) and enc.dtype == jnp.float32, enc.shape
    assert dec.shape == (2, 1, 16, 16) and dec.dtype == jnp.float32, dec.shape

    # Validate against the pure-JAX reference (tolerance covers bf16-on-MXU).
    enc_ref, dec_ref = _reference_forward(model, x, decoder_only=False)
    np.testing.assert_allclose(np.asarray(enc), np.asarray(enc_ref),
                               rtol=5e-2, atol=5e-2)
    np.testing.assert_allclose(np.asarray(dec), np.asarray(dec_ref),
                               rtol=5e-2, atol=5e-2)

    # decoder_only path: feed the low-resolution encoder output straight in.
    enc2, dec2 = model(enc, decoder_only=True)
    jax.block_until_ready(dec2)
    assert enc2.shape == (2, 1, 4, 4) and dec2.shape == (2, 1, 16, 16)
    _, dec2_ref = _reference_forward(model, enc, decoder_only=True)
    np.testing.assert_allclose(np.asarray(dec2), np.asarray(dec2_ref),
                               rtol=5e-2, atol=5e-2)

    print("KERNEL_OK")
</pallas_src>

<mosaic_0001>
module attributes {stable_mosaic.version = 11 : i64} {
  func.func @kernel(%arg0: memref<2x256xf32, #tpu.memory_space<vmem>>, %arg1: memref<256x128xbf16, #tpu.memory_space<vmem>>, %arg2: memref<256x256xbf16, #tpu.memory_space<vmem>>, %arg3: memref<1x256xf32, #tpu.memory_space<vmem>>, %arg4: memref<256x1024xbf16, #tpu.memory_space<vmem>>, %arg5: memref<1024x256xbf16, #tpu.memory_space<vmem>>, %arg6: memref<1x1024xf32, #tpu.memory_space<vmem>>, %arg7: memref<2x128xf32, #tpu.memory_space<vmem>>, %arg8: memref<2x256xf32, #tpu.memory_space<vmem>>) attributes {dimension_semantics = [], scalar_prefetch = 0 : i64, scratch_operands = 0 : i64, tpu.core_type = #tpu.core_type<tc>} {
    %c0 = arith.constant 0 : index
    %c0_0 = arith.constant 0 : index
    %0 = vector.load %arg0[%c0, %c0_0] : memref<2x256xf32, #tpu.memory_space<vmem>>, vector<2x256xf32>
    %1 = arith.truncf %0 : vector<2x256xf32> to vector<2x256xbf16>
    %c0_1 = arith.constant 0 : index
    %c0_2 = arith.constant 0 : index
    %2 = vector.load %arg1[%c0_1, %c0_2] : memref<256x128xbf16, #tpu.memory_space<vmem>>, vector<256x128xbf16>
    %cst = arith.constant dense<0.000000e+00> : vector<2x128xf32>
    %3 = tpu.matmul %1, %2, %cst {dimension_numbers = #tpu.dot_dimension_numbers<[1], [0], [0], [1], [0, 0, 1, 1], [], []>} : vector<2x256xbf16>, vector<256x128xbf16>, vector<2x128xf32> -> vector<2x128xf32>
    %c0_3 = arith.constant 0 : index
    %c0_4 = arith.constant 0 : index
    %4 = vector.load %arg2[%c0_3, %c0_4] : memref<256x256xbf16, #tpu.memory_space<vmem>>, vector<256x256xbf16>
    %cst_5 = arith.constant dense<0.000000e+00> : vector<2x256xf32>
    %5 = tpu.matmul %1, %4, %cst_5 {dimension_numbers = #tpu.dot_dimension_numbers<[1], [0], [0], [1], [0, 0, 1, 1], [], []>} : vector<2x256xbf16>, vector<256x256xbf16>, vector<2x256xf32> -> vector<2x256xf32>
    %cst_6 = arith.constant dense<0.000000e+00> : vector<2xf32>
    %6 = vector.multi_reduction <add>, %3, %cst_6 [1] : vector<2x128xf32> to vector<2xf32>
    %7 = vector.shape_cast %6 : vector<2xf32> to vector<2x1xf32>
    %cst_7 = arith.constant dense<0.000000e+00> : vector<1xf32>
    %8 = vector.multi_reduction <add>, %7, %cst_7 [0] : vector<2x1xf32> to vector<1xf32>
    %9 = vector.shape_cast %8 : vector<1xf32> to vector<1x1xf32>
    %10 = arith.mulf %3, %3 : vector<2x128xf32>
    %cst_8 = arith.constant dense<0.000000e+00> : vector<2xf32>
    %11 = vector.multi_reduction <add>, %10, %cst_8 [1] : vector<2x128xf32> to vector<2xf32>
    %12 = vector.shape_cast %11 : vector<2xf32> to vector<2x1xf32>
    %cst_9 = arith.constant dense<0.000000e+00> : vector<1xf32>
    %13 = vector.multi_reduction <add>, %12, %cst_9 [0] : vector<2x1xf32> to vector<1xf32>
    %14 = vector.shape_cast %13 : vector<1xf32> to vector<1x1xf32>
    %cst_10 = arith.constant 3.125000e-02 : f32
    %15 = vector.broadcast %cst_10 : f32 to vector<1x1xf32>
    %16 = arith.mulf %9, %15 : vector<1x1xf32>
    %cst_11 = arith.constant 3.125000e-02 : f32
    %17 = vector.broadcast %cst_11 : f32 to vector<1x1xf32>
    %18 = arith.mulf %14, %17 : vector<1x1xf32>
    %19 = arith.mulf %16, %16 : vector<1x1xf32>
    %20 = arith.subf %18, %19 : vector<1x1xf32>
    %cst_12 = arith.constant 0.000000e+00 : f32
    %21 = vector.broadcast %cst_12 : f32 to vector<1x1xf32>
    %22 = arith.maximumf %20, %21 : vector<1x1xf32>
    %cst_13 = arith.constant 9.99999974E-6 : f32
    %23 = vector.broadcast %cst_13 : f32 to vector<1x1xf32>
    %24 = arith.addf %22, %23 : vector<1x1xf32>
    %25 = math.rsqrt %24 : vector<1x1xf32>
    %26 = vector.broadcast %16 : vector<1x1xf32> to vector<2x128xf32>
    %27 = arith.subf %3, %26 : vector<2x128xf32>
    %28 = vector.broadcast %25 : vector<1x1xf32> to vector<2x128xf32>
    %29 = arith.mulf %27, %28 : vector<2x128xf32>
    %c0_14 = arith.constant 0 : index
    %c0_15 = arith.constant 0 : index
    %30 = vector.load %arg7[%c0_14, %c0_15] : memref<2x128xf32, #tpu.memory_space<vmem>>, vector<2x128xf32>
    tpu.vector_store %arg7[%c0_14, %c0_15], %29 {strides = array<i32>} : memref<2x128xf32, #tpu.memory_space<vmem>>, vector<2x128xf32>,
    %31 = vector.broadcast %25 : vector<1x1xf32> to vector<2x256xf32>
    %32 = arith.mulf %31, %5 : vector<2x256xf32>
    %33 = arith.mulf %16, %25 : vector<1x1xf32>
    %c0_16 = arith.constant 0 : index
    %c0_17 = arith.constant 0 : index
    %34 = vector.load %arg3[%c0_16, %c0_17] : memref<1x256xf32, #tpu.memory_space<vmem>>, vector<1x256xf32>
    %35 = vector.broadcast %33 : vector<1x1xf32> to vector<1x256xf32>
    %36 = arith.mulf %35, %34 : vector<1x256xf32>
    %37 = vector.broadcast %36 : vector<1x256xf32> to vector<2x256xf32>
    %38 = arith.subf %32, %37 : vector<2x256xf32>
    %cst_18 = arith.constant dense<0.000000e+00> : vector<2xf32>
    %39 = vector.multi_reduction <add>, %38, %cst_18 [1] : vector<2x256xf32> to vector<2xf32>
    %40 = vector.shape_cast %39 : vector<2xf32> to vector<2x1xf32>
    %cst_19 = arith.constant dense<0.000000e+00> : vector<1xf32>
    %41 = vector.multi_reduction <add>, %40, %cst_19 [0] : vector<2x1xf32> to vector<1xf32>
    %42 = vector.shape_cast %41 : vector<1xf32> to vector<1x1xf32>
    %43 = arith.mulf %38, %38 : vector<2x256xf32>
    %cst_20 = arith.constant dense<0.000000e+00> : vector<2xf32>
    %44 = vector.multi_reduction <add>, %43, %cst_20 [1] : vector<2x256xf32> to vector<2xf32>
    %45 = vector.shape_cast %44 : vector<2xf32> to vector<2x1xf32>
    %cst_21 = arith.constant dense<0.000000e+00> : vector<1xf32>
    %46 = vector.multi_reduction <add>, %45, %cst_21 [0] : vector<2x1xf32> to vector<1xf32>
    %47 = vector.shape_cast %46 : vector<1xf32> to vector<1x1xf32>
    %cst_22 = arith.constant 0.001953125 : f32
    %48 = vector.broadcast %cst_22 : f32 to vector<1x1xf32>
    %49 = arith.mulf %42, %48 : vector<1x1xf32>
    %cst_23 = arith.constant 0.001953125 : f32
    %50 = vector.broadcast %cst_23 : f32 to vector<1x1xf32>
    %51 = arith.mulf %47, %50 : vector<1x1xf32>
    %52 = arith.mulf %49, %49 : vector<1x1xf32>
    %53 = arith.subf %51, %52 : vector<1x1xf32>
    %cst_24 = arith.constant 0.000000e+00 : f32
    %54 = vector.broadcast %cst_24 : f32 to vector<1x1xf32>
    %55 = arith.maximumf %53, %54 : vector<1x1xf32>
    %cst_25 = arith.constant 9.99999974E-6 : f32
    %56 = vector.broadcast %cst_25 : f32 to vector<1x1xf32>
    %57 = arith.addf %55, %56 : vector<1x1xf32>
    %58 = math.rsqrt %57 : vector<1x1xf32>
    %59 = vector.broadcast %49 : vector<1x1xf32> to vector<2x256xf32>
    %60 = arith.subf %38, %59 : vector<2x256xf32>
    %61 = vector.broadcast %58 : vector<1x1xf32> to vector<2x256xf32>
    %62 = arith.mulf %60, %61 : vector<2x256xf32>
    %c0_26 = arith.constant 0 : index
    %c0_27 = arith.constant 0 : index
    %63 = vector.load %arg4[%c0_26, %c0_27] : memref<256x1024xbf16, #tpu.memory_space<vmem>>, vector<256x1024xbf16>
    %c0_28 = arith.constant 0 : index
    %c0_29 = arith.constant 0 : index
    %64 = vector.load %arg5[%c0_28, %c0_29] : memref<1024x256xbf16, #tpu.memory_space<vmem>>, vector<1024x256xbf16>
    %c0_30 = arith.constant 0 : index
    %c0_31 = arith.constant 0 : index
    %65 = vector.load %arg6[%c0_30, %c0_31] : memref<1x1024xf32, #tpu.memory_space<vmem>>, vector<1x1024xf32>
    %66 = vector.shape_cast %65 : vector<1x1024xf32> to vector<1x1024xf32>
    %67 = vector.broadcast %66 : vector<1x1024xf32> to vector<2x1024xf32>
    %cst_32 = arith.constant 0.000000e+00 : f32
    %68 = vector.broadcast %cst_32 : f32 to vector<2x1024xf32>
    %69 = arith.subf %68, %67 : vector<2x1024xf32>
    %70 = arith.truncf %62 : vector<2x256xf32> to vector<2x256xbf16>
    %cst_33 = arith.constant dense<0.000000e+00> : vector<2x1024xf32>
    %71 = tpu.matmul %70, %63, %cst_33 {dimension_numbers = #tpu.dot_dimension_numbers<[1], [0], [0], [1], [0, 0, 1, 1], [], []>} : vector<2x256xbf16>, vector<256x1024xbf16>, vector<2x1024xf32> -> vector<2x1024xf32>
    %72 = arith.maximumf %69, %71 : vector<2x1024xf32>
    %73 = arith.minimumf %67, %72 : vector<2x1024xf32>
    %74 = arith.subf %71, %73 : vector<2x1024xf32>
    %75 = arith.truncf %74 : vector<2x1024xf32> to vector<2x1024xbf16>
    %cst_34 = arith.constant dense<0.000000e+00> : vector<2x256xf32>
    %76 = tpu.matmul %75, %64, %cst_34 {dimension_numbers = #tpu.dot_dimension_numbers<[1], [0], [0], [1], [0, 0, 1, 1], [], []>} : vector<2x1024xbf16>, vector<1024x256xbf16>, vector<2x256xf32> -> vector<2x256xf32>
    %77 = arith.subf %62, %76 : vector<2x256xf32>
    %78 = arith.truncf %77 : vector<2x256xf32> to vector<2x256xbf16>
    %cst_35 = arith.constant dense<0.000000e+00> : vector<2x1024xf32>
    %79 = tpu.matmul %78, %63, %cst_35 {dimension_numbers = #tpu.dot_dimension_numbers<[1], [0], [0], [1], [0, 0, 1, 1], [], []>} : vector<2x256xbf16>, vector<256x1024xbf16>, vector<2x1024xf32> -> vector<2x1024xf32>
    %80 = arith.addf %74, %79 : vector<2x1024xf32>
    %81 = arith.maximumf %69, %80 : vector<2x1024xf32>
    %82 = arith.minimumf %67, %81 : vector<2x1024xf32>
    %83 = arith.subf %80, %82 : vector<2x1024xf32>
    %84 = arith.truncf %83 : vector<2x1024xf32> to vector<2x1024xbf16>
    %cst_36 = arith.constant dense<0.000000e+00> : vector<2x256xf32>
    %85 = tpu.matmul %84, %64, %cst_36 {dimension_numbers = #tpu.dot_dimension_numbers<[1], [0], [0], [1], [0, 0, 1, 1], [], []>} : vector<2x1024xbf16>, vector<1024x256xbf16>, vector<2x256xf32> -> vector<2x256xf32>
    %c0_37 = arith.constant 0 : index
    %c0_38 = arith.constant 0 : index
    %86 = vector.load %arg8[%c0_37, %c0_38] : memref<2x256xf32, #tpu.memory_space<vmem>>, vector<2x256xf32>
    tpu.vector_store %arg8[%c0_37, %c0_38], %85 {strides = array<i32>} : memref<2x256xf32, #tpu.memory_space<vmem>>, vector<2x256xf32>,
    return
  }
}

</mosaic_0001>

<llo_original>
// kernel: tpu_custom_call.1
$region0: #{tpu_custom_call.1}
  #allocation0 [shape = 'u32[]', space=smem, size = 0x4, offset = 0x4, fixed_abs, tag = 'smem constant byte address 0x4 - core index']
  #allocation1 [shape = 'u32[72,128]{1,0:T(1,128)}', space=vmem, size = 0x9000, scoped, tag = 'internal scratch']
  %s0 = inlined_call_operand.hbm [shape: f32[2,256], index: 0, kind: input, shape index: {}]
  %s1 = inlined_call_operand.hbm [shape: bf16[256,128], index: 1, kind: input, shape index: {}]
  %s2 = inlined_call_operand.hbm [shape: bf16[256,256], index: 2, kind: input, shape index: {}]
  %s3 = inlined_call_operand.vmem [shape: f32[1,256], index: 3, kind: input, shape index: {}]
  %s4 = inlined_call_operand.hbm [shape: bf16[256,1024], index: 4, kind: input, shape index: {}]
  %s5 = inlined_call_operand.hbm [shape: bf16[1024,256], index: 5, kind: input, shape index: {}]
  %s6 = inlined_call_operand.hbm [shape: f32[1,1024], index: 6, kind: input, shape index: {}]
  %s7 = inlined_call_operand.hbm [shape: f32[2,128], index: 7, kind: output, shape index: {0}]
  %s8 = inlined_call_operand.hbm [shape: f32[2,256], index: 8, kind: output, shape index: {1}]
  %9 = xla_tuple %s7, %s8
  %s10 = sld [smem:[#allocation0]]
  $region70: #{tpu_custom_call.1} parent=0
    _
  %s12 = ssub.s32 1, %s10
  %s13 = scalar_select 0, %s12, %s10
  $region1: #{tpu_custom_call.1} parent=0
    #allocation2 [shape = 'u8[2048]{0}', space=vmem, size = 0x800, scoped, tag = 'input window, operand 0, single buffered']
    #allocation3 [shape = 's32[1]{0}', space=sflag, size = 0x4, scoped, tag = 'scoped memory for tpu_custom_call.1']
    #allocation4 [shape = 's32[1]{0}', space=sflag, size = 0x4, scoped, tag = 'scoped memory for tpu_custom_call.1']
    #allocation5 [shape = 'u8[65536]{0}', space=vmem, size = 0x10000, scoped, tag = 'input window, operand 1, single buffered']
    #allocation6 [shape = 's32[1]{0}', space=sflag, size = 0x4, scoped, tag = 'scoped memory for tpu_custom_call.1']
    #allocation7 [shape = 'u8[131072]{0}', space=vmem, size = 0x20000, scoped, tag = 'input window, operand 2, single buffered']
    #allocation8 [shape = 'u8[524288]{0}', space=vmem, size = 0x80000, scoped, tag = 'input window, operand 4, single buffered']
    #allocation9 [shape = 's32[1]{0}', space=sflag, size = 0x4, scoped, tag = 'scoped memory for tpu_custom_call.1']
    #allocation10 [shape = 'u8[524288]{0}', space=vmem, size = 0x80000, scoped, tag = 'input window, operand 5, single buffered']
    #allocation11 [shape = 'u8[4096]{0}', space=vmem, size = 0x1000, scoped, tag = 'input window, operand 6, single buffered']
    #allocation12 [shape = 's32[1]{0}', space=sflag, size = 0x4, scoped, tag = 'scoped memory for tpu_custom_call.1']
    #allocation13 [shape = 'u8[1024]{0}', space=vmem, size = 0x400, scoped, tag = 'output window, operand 0, single buffered']
    #allocation14 [shape = 'u8[2048]{0}', space=vmem, size = 0x800, scoped, tag = 'output window, operand 1, single buffered']
    #allocation15 [shape = 's32[1]{0}', space=sflag, size = 0x4, scoped, tag = 'scoped memory for tpu_custom_call.1']
    %14 = vsyncpa [#allocation3], 0
    %15 = vsyncpa [#allocation6], 0
    %16 = vsyncpa [#allocation9], 0
    %17 = vsyncpa [#allocation12], 0
    %18 = vsyncpa [#allocation4], 0
    %19 = vsyncpa [#allocation15], 0
    // Predicated region
    $region2: #{tpu_custom_call.1} parent=1 // pred_check
      _
    $region3: #{tpu_custom_call.1} parent=1 // pred_check_branch
      %21 = sbr.rel (0) target = $region5
    $region4: #{tpu_custom_call.1} parent=1 // pred_region
      %23 = vsyncadd [#allocation3], 0
      %s25 = sshll.u32 %s0, 4
      %s26 = int_to_ptr.hbm [resolvable:$true] %s25
      %s27 = sshll.u32 [#allocation2], 4
      %s28 = int_to_ptr.vmem [resolvable:$true] %s27
      %30 = dma.hbm_to_vmem [thread:$0]  %s26, 64, %s28, [#allocation3]
    $region5: #{tpu_custom_call.1} parent=1 // pred_fallthru
      _
    // Predicated region
    $region6: #{tpu_custom_call.1} parent=1 // pred_check
      _
    $region7: #{tpu_custom_call.1} parent=1 // pred_check_branch
      %32 = sbr.rel (0) target = $region9
    $region8: #{tpu_custom_call.1} parent=1 // pred_region
      %34 = vsyncadd [#allocation6], 0
      %s35 = sshll.u32 %s1, 4
      %s36 = int_to_ptr.hbm [resolvable:$true] %s35
      %s37 = sshll.u32 [#allocation5], 4
      %s38 = int_to_ptr.vmem [resolvable:$true] %s37
      %43 = dma.hbm_to_vmem [thread:$0]  %s36, 2048, %s38, [#allocation6], 64, 64, 4
    $region9: #{tpu_custom_call.1} parent=1 // pred_fallthru
      _
    // Predicated region
    $region10: #{tpu_custom_call.1} parent=1 // pred_check
      _
    $region11: #{tpu_custom_call.1} parent=1 // pred_check_branch
      %45 = sbr.rel (0) target = $region13
    $region12: #{tpu_custom_call.1} parent=1 // pred_region
      %47 = vsyncadd [#allocation6], 0
      %s48 = sshll.u32 %s2, 4
      %s49 = int_to_ptr.hbm [resolvable:$true] %s48
      %s50 = sshll.u32 [#allocation7], 4
      %s51 = int_to_ptr.vmem [resolvable:$true] %s50
      %56 = dma.hbm_to_vmem [thread:$0]  %s49, 4096, %s51, [#allocation6], 128, 128, 8
    $region13: #{tpu_custom_call.1} parent=1 // pred_fallthru
      _
    // Predicated region
    $region14: #{tpu_custom_call.1} parent=1 // pred_check
      _
    $region15: #{tpu_custom_call.1} parent=1 // pred_check_branch
      %58 = sbr.rel (0) target = $region17
    $region16: #{tpu_custom_call.1} parent=1 // pred_region
      _
    $region17: #{tpu_custom_call.1} parent=1 // pred_fallthru
      _
    // Predicated region
    $region18: #{tpu_custom_call.1} parent=1 // pred_check
      _
    $region19: #{tpu_custom_call.1} parent=1 // pred_check_branch
      %60 = sbr.rel (0) target = $region21
    $region20: #{tpu_custom_call.1} parent=1 // pred_region
      %62 = vsyncadd [#allocation9], 0
      %s63 = sshll.u32 %s4, 4
      %s64 = int_to_ptr.hbm [resolvable:$true] %s63
      %s65 = sshll.u32 [#allocation8], 4
      %s66 = int_to_ptr.vmem [resolvable:$true] %s65
      %71 = dma.hbm_to_vmem [thread:$0]  %s64, 16384, %s66, [#allocation9], 512, 512, 32
    $region21: #{tpu_custom_call.1} parent=1 // pred_fallthru
      _
    // Predicated region
    $region22: #{tpu_custom_call.1} parent=1 // pred_check
      _
    $region23: #{tpu_custom_call.1} parent=1 // pred_check_branch
      %73 = sbr.rel (0) target = $region25
    $region24: #{tpu_custom_call.1} parent=1 // pred_region
      %75 = vsyncadd [#allocation9], 0
      %s76 = sshll.u32 %s5, 4
      %s77 = int_to_ptr.hbm [resolvable:$true] %s76
      %s78 = sshll.u32 [#allocation10], 4
      %s79 = int_to_ptr.vmem [resolvable:$true] %s78
      %84 = dma.hbm_to_vmem [thread:$0]  %s77, 16384, %s79, [#allocation9], 128, 128, 8
    $region25: #{tpu_custom_call.1} parent=1 // pred_fallthru
      _
    // Predicated region
    $region26: #{tpu_custom_call.1} parent=1 // pred_check
      _
    $region27: #{tpu_custom_call.1} parent=1 // pred_check_branch
      %86 = sbr.rel (0) target = $region29
    $region28: #{tpu_custom_call.1} parent=1 // pred_region
      %88 = vsyncadd [#allocation12], 0
      %s90 = sshll.u32 %s6, 4
      %s91 = int_to_ptr.hbm [resolvable:$true] %s90
      %s92 = sshll.u32 [#allocation11], 4
      %s93 = int_to_ptr.vmem [resolvable:$true] %s92
      %95 = dma.hbm_to_vmem [thread:$0]  %s91, 128, %s93, [#allocation12]
    $region29: #{tpu_custom_call.1} parent=1 // pred_fallthru
      _
    // Predicated region
    $region30: #{tpu_custom_call.1} parent=1 // pred_check
      _
    $region31: #{tpu_custom_call.1} parent=1 // pred_check_branch
      %97 = sbr.rel (0) target = $region33
    $region32: #{tpu_custom_call.1} parent=1 // pred_region
      %99 = dma.done [#allocation3], 64
    $region33: #{tpu_custom_call.1} parent=1 // pred_fallthru
      _
    // Predicated region
    $region34: #{tpu_custom_call.1} parent=1 // pred_check
      _
    $region35: #{tpu_custom_call.1} parent=1 // pred_check_branch
      %101 = sbr.rel (0) target = $region37
    $region36: #{tpu_custom_call.1} parent=1 // pred_region
      %103 = dma.done [#allocation6], 2048
    $region37: #{tpu_custom_call.1} parent=1 // pred_fallthru
      _
    // Predicated region
    $region38: #{tpu_custom_call.1} parent=1 // pred_check
      _
    $region39: #{tpu_custom_call.1} parent=1 // pred_check_branch
      %105 = sbr.rel (0) target = $region41
    $region40: #{tpu_custom_call.1} parent=1 // pred_region
      %107 = dma.done [#allocation6], 4096
    $region41: #{tpu_custom_call.1} parent=1 // pred_fallthru
      _
    // Predicated region
    $region42: #{tpu_custom_call.1} parent=1 // pred_check
      _
    $region43: #{tpu_custom_call.1} parent=1 // pred_check_branch
      %109 = sbr.rel (0) target = $region45
    $region44: #{tpu_custom_call.1} parent=1 // pred_region
      %111 = dma.done [#allocation9], 16384
    $region45: #{tpu_custom_call.1} parent=1 // pred_fallthru
      _
    // Predicated region
    $region46: #{tpu_custom_call.1} parent=1 // pred_check
      _
    $region47: #{tpu_custom_call.1} parent=1 // pred_check_branch
      %113 = sbr.rel (0) target = $region49
    $region48: #{tpu_custom_call.1} parent=1 // pred_region
      %115 = dma.done [#allocation9], 16384
    $region49: #{tpu_custom_call.1} parent=1 // pred_fallthru
      _
    // Predicated region
    $region50: #{tpu_custom_call.1} parent=1 // pred_check
      _
    $region51: #{tpu_custom_call.1} parent=1 // pred_check_branch
      %117 = sbr.rel (0) target = $region53
    $region52: #{tpu_custom_call.1} parent=1 // pred_region
      %119 = dma.done [#allocation12], 128
    $region53: #{tpu_custom_call.1} parent=1 // pred_fallthru
      _
    %v120 = vld [vmem:[#allocation2] sm:$0xf]
    %122 = vst [vmem:[#allocation1] ss:$4 sm:$0xff] %v120
    %v123 = vld.sshfl [vmem:[#allocation1] sm:$0xff pattern:$0x73625140]
    %v124 = vld.sshfl [vmem:[#allocation1 + $0x8] sm:$0xff pattern:$0x73625140]
    %v127 = vpack.c.bf16 %v123, %v123
    %v128 = vpack.c.bf16 %v124, %v124
    %v129 = vld [vmem:[#allocation5] sm:$0xf]
    %v130 = vld [vmem:[#allocation5 + $0x4] sm:$0xf]
    %v131 = vld [vmem:[#allocation5 + $0x8] sm:$0xf]
    %v132 = vld [vmem:[#allocation5 + $0xc] sm:$0xf]
    %v133 = vld [vmem:[#allocation5 + $0x10] sm:$0xf]
    %v134 = vld [vmem:[#allocation5 + $0x14] sm:$0xf]
    %v135 = vld [vmem:[#allocation5 + $0x18] sm:$0xf]
    %v136 = vld [vmem:[#allocation5 + $0x1c] sm:$0xf]
    %v137 = vld [vmem:[#allocation5 + $0x20] sm:$0xf]
    %v138 = vld [vmem:[#allocation5 + $0x24] sm:$0xf]
    %v139 = vld [vmem:[#allocation5 + $0x28] sm:$0xf]
    %v140 = vld [vmem:[#allocation5 + $0x2c] sm:$0xf]
    %v141 = vld [vmem:[#allocation5 + $0x30] sm:$0xf]
    %v142 = vld [vmem:[#allocation5 + $0x34] sm:$0xf]
    %v143 = vld [vmem:[#allocation5 + $0x38] sm:$0xf]
    %v144 = vld [vmem:[#allocation5 + $0x3c] sm:$0xf]
    %v145 = vld [vmem:[#allocation5 + $0x40] sm:$0xf]
    %v146 = vld [vmem:[#allocation5 + $0x44] sm:$0xf]
    %v147 = vld [vmem:[#allocation5 + $0x48] sm:$0xf]
    %v148 = vld [vmem:[#allocation5 + $0x4c] sm:$0xf]
    %v149 = vld [vmem:[#allocation5 + $0x50] sm:$0xf]
    %v150 = vld [vmem:[#allocation5 + $0x54] sm:$0xf]
    %v151 = vld [vmem:[#allocation5 + $0x58] sm:$0xf]
    %v152 = vld [vmem:[#allocation5 + $0x5c] sm:$0xf]
    %v153 = vld [vmem:[#allocation5 + $0x60] sm:$0xf]
    %v154 = vld [vmem:[#allocation5 + $0x64] sm:$0xf]
    %v155 = vld [vmem:[#allocation5 + $0x68] sm:$0xf]
    %v156 = vld [vmem:[#allocation5 + $0x6c] sm:$0xf]
    %v157 = vld [vmem:[#allocation5 + $0x70] sm:$0xf]
    %v158 = vld [vmem:[#allocation5 + $0x74] sm:$0xf]
    %v159 = vld [vmem:[#allocation5 + $0x78] sm:$0xf]
    %v160 = vld [vmem:[#allocation5 + $0x7c] sm:$0xf]
    %v193 = vunpack.c.l.b16 %v129
    %v194 = vunpack.c.l.b16 %v130
    %v195 = vunpack.c.l.b16 %v131
    %v196 = vunpack.c.l.b16 %v132
    %v197 = vunpack.c.l.b16 %v133
    %v198 = vunpack.c.l.b16 %v134
    %v199 = vunpack.c.l.b16 %v135
    %v200 = vunpack.c.l.b16 %v136
    %v201 = vunpack.c.l.b16 %v137
    %v202 = vunpack.c.l.b16 %v138
    %v203 = vunpack.c.l.b16 %v139
    %v204 = vunpack.c.l.b16 %v140
    %v205 = vunpack.c.l.b16 %v141
    %v206 = vunpack.c.l.b16 %v142
    %v207 = vunpack.c.l.b16 %v143
    %v208 = vunpack.c.l.b16 %v144
    %v209 = vunpack.c.l.b16 %v145
    %v210 = vunpack.c.l.b16 %v146
    %v211 = vunpack.c.l.b16 %v147
    %v212 = vunpack.c.l.b16 %v148
    %v213 = vunpack.c.l.b16 %v149
    %v214 = vunpack.c.l.b16 %v150
    %v215 = vunpack.c.l.b16 %v151
    %v216 = vunpack.c.l.b16 %v152
    %v217 = vunpack.c.l.b16 %v153
    %v218 = vunpack.c.l.b16 %v154
    %v219 = vunpack.c.l.b16 %v155
    %v220 = vunpack.c.l.b16 %v156
    %v221 = vunpack.c.l.b16 %v157
    %v222 = vunpack.c.l.b16 %v158
    %v223 = vunpack.c.l.b16 %v159
    %v224 = vunpack.c.l.b16 %v160
    %v225 = vpack.c.b16 %v194, %v193
    %v226 = vpack.c.b16 %v196, %v195
    %v227 = vpack.c.b16 %v198, %v197
    %v228 = vpack.c.b16 %v200, %v199
    %v229 = vpack.c.b16 %v202, %v201
    %v230 = vpack.c.b16 %v204, %v203
    %v231 = vpack.c.b16 %v206, %v205
    %v232 = vpack.c.b16 %v208, %v207
    %v233 = vpack.c.b16 %v210, %v209
    %v234 = vpack.c.b16 %v212, %v211
    %v235 = vpack.c.b16 %v214, %v213
    %v236 = vpack.c.b16 %v216, %v215
    %v237 = vpack.c.b16 %v218, %v217
    %v238 = vpack.c.b16 %v220, %v219
    %v239 = vpack.c.b16 %v222, %v221
    %v240 = vpack.c.b16 %v224, %v223
    %257 = vmatpush.bf16.msra.mxu0 %v232
    %258 = vmatpush.bf16.msra.mxu0 %v231
    %259 = vmatpush.bf16.msra.mxu0 %v230
    %260 = vmatpush.bf16.msra.mxu0 %v229
    %261 = vmatpush.bf16.msra.mxu0 %v228
    %262 = vmatpush.bf16.msra.mxu0 %v227
    %263 = vmatpush.bf16.msra.mxu0 %v226
    %264 = vmatpush.bf16.msra.mxu0 %v225
    %265 = vmatmul.bf16.gmra.mxu0 %v127
    %v266 = vpop.f32.mrf.mxu0
    %v267 = vadd.f32 0.0, %v266
    %v268 = vpop.f32.mrf.mxu0
    %269 = vdwg.mxu0
    %270 = vmatpush.bf16.msra.mxu0 %v240
    %271 = vmatpush.bf16.msra.mxu0 %v239
    %272 = vmatpush.bf16.msra.mxu0 %v238
    %273 = vmatpush.bf16.msra.mxu0 %v237
    %274 = vmatpush.bf16.msra.mxu0 %v236
    %275 = vmatpush.bf16.msra.mxu0 %v235
    %276 = vmatpush.bf16.msra.mxu0 %v234
    %277 = vmatpush.bf16.msra.mxu0 %v233
    %278 = vmatmul.bf16.gmra.mxu0 %v128
    %v279 = vpop.f32.mrf.mxu0
    %v280 = vadd.f32 %v267, %v279
    %v281 = vpop.f32.mrf.mxu0
    %282 = vdwg.mxu0
    %v283 = vld [vmem:[#allocation7] sm:$0xff]
    %v284 = vld [vmem:[#allocation7 + $0x8] sm:$0xff]
    %v285 = vld [vmem:[#allocation7 + $0x10] sm:$0xff]
    %v286 = vld [vmem:[#allocation7 + $0x18] sm:$0xff]
    %v287 = vld [vmem:[#allocation7 + $0x20] sm:$0xff]
    %v288 = vld [vmem:[#allocation7 + $0x28] sm:$0xff]
    %v289 = vld [vmem:[#allocation7 + $0x30] sm:$0xff]
    %v290 = vld [vmem:[#allocation7 + $0x38] sm:$0xff]
    %v291 = vld [vmem:[#allocation7 + $0x40] sm:$0xff]
    %v292 = vld [vmem:[#allocation7 + $0x48] sm:$0xff]
    %v293 = vld [vmem:[#allocation7 + $0x50] sm:$0xff]
    %v294 = vld [vmem:[#allocation7 + $0x58] sm:$0xff]
    %v295 = vld [vmem:[#allocation7 + $0x60] sm:$0xff]
    %v296 = vld [vmem:[#allocation7 + $0x68] sm:$0xff]
    %v297 = vld [vmem:[#allocation7 + $0x70] sm:$0xff]
    %v298 = vld [vmem:[#allocation7 + $0x78] sm:$0xff]
    %v299 = vld [vmem:[#allocation7 + $0x80] sm:$0xff]
    %v300 = vld [vmem:[#allocation7 + $0x88] sm:$0xff]
    %v301 = vld [vmem:[#allocation7 + $0x90] sm:$0xff]
    %v302 = vld [vmem:[#allocation7 + $0x98] sm:$0xff]
    %v303 = vld [vmem:[#allocation7 + $0xa0] sm:$0xff]
    %v304 = vld [vmem:[#allocation7 + $0xa8] sm:$0xff]
    %v305 = vld [vmem:[#allocation7 + $0xb0] sm:$0xff]
    %v306 = vld [vmem:[#allocation7 + $0xb8] sm:$0xff]
    %v307 = vld [vmem:[#allocation7 + $0xc0] sm:$0xff]
    %v308 = vld [vmem:[#allocation7 + $0xc8] sm:$0xff]
    %v309 = vld [vmem:[#allocation7 + $0xd0] sm:$0xff]
    %v310 = vld [vmem:[#allocation7 + $0xd8] sm:$0xff]
    %v311 = vld [vmem:[#allocation7 + $0xe0] sm:$0xff]
    %v312 = vld [vmem:[#allocation7 + $0xe8] sm:$0xff]
    %v313 = vld [vmem:[#allocation7 + $0xf0] sm:$0xff]
    %v314 = vld [vmem:[#allocation7 + $0xf8] sm:$0xff]
    %v347 = vunpack.c.l.b16 %v283
    %v348 = vunpack.c.h.b16 %v283
    %v349 = vunpack.c.l.b16 %v284
    %v350 = vunpack.c.h.b16 %v284
    %v351 = vunpack.c.l.b16 %v285
    %v352 = vunpack.c.h.b16 %v285
    %v353 = vunpack.c.l.b16 %v286
    %v354 = vunpack.c.h.b16 %v286
    %v355 = vunpack.c.l.b16 %v287
    %v356 = vunpack.c.h.b16 %v287
    %v357 = vunpack.c.l.b16 %v288
    %v358 = vunpack.c.h.b16 %v288
    %v359 = vunpack.c.l.b16 %v289
    %v360 = vunpack.c.h.b16 %v289
    %v361 = vunpack.c.l.b16 %v290
    %v362 = vunpack.c.h.b16 %v290
    %v363 = vunpack.c.l.b16 %v291
    %v364 = vunpack.c.h.b16 %v291
    %v365 = vunpack.c.l.b16 %v292
    %v366 = vunpack.c.h.b16 %v292
    %v367 = vunpack.c.l.b16 %v293
    %v368 = vunpack.c.h.b16 %v293
    %v369 = vunpack.c.l.b16 %v294
    %v370 = vunpack.c.h.b16 %v294
    %v371 = vunpack.c.l.b16 %v295
    %v372 = vunpack.c.h.b16 %v295
    %v373 = vunpack.c.l.b16 %v296
    %v374 = vunpack.c.h.b16 %v296
    %v375 = vunpack.c.l.b16 %v297
    %v376 = vunpack.c.h.b16 %v297
    %v377 = vunpack.c.l.b16 %v298
    %v378 = vunpack.c.h.b16 %v298
    %v379 = vunpack.c.l.b16 %v299
    %v380 = vunpack.c.h.b16 %v299
    %v381 = vunpack.c.l.b16 %v300
    %v382 = vunpack.c.h.b16 %v300
    %v383 = vunpack.c.l.b16 %v301
    %v384 = vunpack.c.h.b16 %v301
    %v385 = vunpack.c.l.b16 %v302
    %v386 = vunpack.c.h.b16 %v302
    %v387 = vunpack.c.l.b16 %v303
    %v388 = vunpack.c.h.b16 %v303
    %v389 = vunpack.c.l.b16 %v304
    %v390 = vunpack.c.h.b16 %v304
    %v391 = vunpack.c.l.b16 %v305
    %v392 = vunpack.c.h.b16 %v305
    %v393 = vunpack.c.l.b16 %v306
    %v394 = vunpack.c.h.b16 %v306
    %v395 = vunpack.c.l.b16 %v307
    %v396 = vunpack.c.h.b16 %v307
    %v397 = vunpack.c.l.b16 %v308
    %v398 = vunpack.c.h.b16 %v308
    %v399 = vunpack.c.l.b16 %v309
    %v400 = vunpack.c.h.b16 %v309
    %v401 = vunpack.c.l.b16 %v310
    %v402 = vunpack.c.h.b16 %v310
    %v403 = vunpack.c.l.b16 %v311
    %v404 = vunpack.c.h.b16 %v311
    %v405 = vunpack.c.l.b16 %v312
    %v406 = vunpack.c.h.b16 %v312
    %v407 = vunpack.c.l.b16 %v313
    %v408 = vunpack.c.h.b16 %v313
    %v409 = vunpack.c.l.b16 %v314
    %v410 = vunpack.c.h.b16 %v314
    %v411 = vpack.c.b16 %v349, %v347
    %v412 = vpack.c.b16 %v350, %v348
    %v413 = vpack.c.b16 %v353, %v351
    %v414 = vpack.c.b16 %v354, %v352
    %v415 = vpack.c.b16 %v357, %v355
    %v416 = vpack.c.b16 %v358, %v356
    %v417 = vpack.c.b16 %v361, %v359
    %v418 = vpack.c.b16 %v362, %v360
    %v419 = vpack.c.b16 %v365, %v363
    %v420 = vpack.c.b16 %v366, %v364
    %v421 = vpack.c.b16 %v369, %v367
    %v422 = vpack.c.b16 %v370, %v368
    %v423 = vpack.c.b16 %v373, %v371
    %v424 = vpack.c.b16 %v374, %v372
    %v425 = vpack.c.b16 %v377, %v375
    %v426 = vpack.c.b16 %v378, %v376
    %v427 = vpack.c.b16 %v381, %v379
    %v428 = vpack.c.b16 %v382, %v380
    %v429 = vpack.c.b16 %v385, %v383
    %v430 = vpack.c.b16 %v386, %v384
    %v431 = vpack.c.b16 %v389, %v387
    %v432 = vpack.c.b16 %v390, %v388
    %v433 = vpack.c.b16 %v393, %v391
    %v434 = vpack.c.b16 %v394, %v392
    %v435 = vpack.c.b16 %v397, %v395
    %v436 = vpack.c.b16 %v398, %v396
    %v437 = vpack.c.b16 %v401, %v399
    %v438 = vpack.c.b16 %v402, %v400
    %v439 = vpack.c.b16 %v405, %v403
    %v440 = vpack.c.b16 %v406, %v404
    %v441 = vpack.c.b16 %v409, %v407
    %v442 = vpack.c.b16 %v410, %v408
    %475 = vmatpush.bf16.msra.mxu0 %v425
    %476 = vmatpush.bf16.msra.mxu0 %v423
    %477 = vmatpush.bf16.msra.mxu0 %v421
    %478 = vmatpush.bf16.msra.mxu0 %v419
    %479 = vmatpush.bf16.msra.mxu0 %v417
    %480 = vmatpush.bf16.msra.mxu0 %v415
    %481 = vmatpush.bf16.msra.mxu0 %v413
    %482 = vmatpush.bf16.msra.mxu0 %v411
    %483 = vmatmul.bf16.gmra.mxu0 %v127
    %v484 = vpop.f32.mrf.mxu0
    %v485 = vadd.f32 0.0, %v484
    %v486 = vpop.f32.mrf.mxu0
    %487 = vdwg.mxu0
    %488 = vmatpush.bf16.msra.mxu0 %v441
    %489 = vmatpush.bf16.msra.mxu0 %v439
    %490 = vmatpush.bf16.msra.mxu0 %v437
    %491 = vmatpush.bf16.msra.mxu0 %v435
    %492 = vmatpush.bf16.msra.mxu0 %v433
    %493 = vmatpush.bf16.msra.mxu0 %v431
    %494 = vmatpush.bf16.msra.mxu0 %v429
    %495 = vmatpush.bf16.msra.mxu0 %v427
    %496 = vmatmul.bf16.gmra.mxu0 %v128
    %v497 = vpop.f32.mrf.mxu0
    %v498 = vadd.f32 %v485, %v497
    %v499 = vpop.f32.mrf.mxu0
    %500 = vdwg.mxu0
    %501 = vmatpush.bf16.msra.mxu0 %v426
    %502 = vmatpush.bf16.msra.mxu0 %v424
    %503 = vmatpush.bf16.msra.mxu0 %v422
    %504 = vmatpush.bf16.msra.mxu0 %v420
    %505 = vmatpush.bf16.msra.mxu0 %v418
    %506 = vmatpush.bf16.msra.mxu0 %v416
    %507 = vmatpush.bf16.msra.mxu0 %v414
    %508 = vmatpush.bf16.msra.mxu0 %v412
    %509 = vmatmul.bf16.gmra.mxu0 %v127
    %v510 = vpop.f32.mrf.mxu0
    %v511 = vadd.f32 0.0, %v510
    %v512 = vpop.f32.mrf.mxu0
    %513 = vdwg.mxu0
    %514 = vmatpush.bf16.msra.mxu0 %v442
    %515 = vmatpush.bf16.msra.mxu0 %v440
    %516 = vmatpush.bf16.msra.mxu0 %v438
    %517 = vmatpush.bf16.msra.mxu0 %v436
    %518 = vmatpush.bf16.msra.mxu0 %v434
    %519 = vmatpush.bf16.msra.mxu0 %v432
    %520 = vmatpush.bf16.msra.mxu0 %v430
    %521 = vmatpush.bf16.msra.mxu0 %v428
    %522 = vmatmul.bf16.gmra.mxu0 %v128
    %v523 = vpop.f32.mrf.mxu0
    %v524 = vadd.f32 %v511, %v523
    %v525 = vpop.f32.mrf.mxu0
    %526 = vdwg.mxu0
    %vm527 = vcmask 1041408
    %v528 = vsel %vm527, %v280, 0.0
    %529 = vadd.xlane.f32.xlu0 %v528
    %v530 = vpop.xlane.xlu0 %529
    %v531 = vsel %vm527, %v530, 0.0
    %v532 = vrot.slane %v531, 4
    %v533 = vadd.f32 %v531, %v532
    %v534 = vrot.slane %v533, 2
    %v535 = vadd.f32 %v533, %v534
    %v536 = vrot.slane %v535, 1
    %v537 = vadd.f32 %v535, %v536
    %v538 = vmul.f32 %v280, %v280
    %v539 = vsel %vm527, %v538, 0.0
    %540 = vadd.xlane.f32.xlu0 %v539
    %v541 = vpop.xlane.xlu0 %540
    %v542 = vsel %vm527, %v541, 0.0
    %v543 = vrot.slane %v542, 4
    %v544 = vadd.f32 %v542, %v543
    %v545 = vrot.slane %v544, 2
    %v546 = vadd.f32 %v544, %v545
    %v547 = vrot.slane %v546, 1
    %v548 = vadd.f32 %v546, %v547
    %v549 = vmul.f32 %v537, 0.03125
    %v550 = vmul.f32 %v548, 0.03125
    %v551 = vmul.f32 %v549, %v549
    %v552 = vsub.f32 %v550, %v551
    %v553 = vmax.f32 %v552, 0.0
    %v554 = vadd.f32 %v553, 1e-05
    %v555 = vrsqrt.pop %v554
    %v556 = vmul.f32 %v555, %v554
    %v557 = vmul.f32 %v556, %v555
    %v558 = vmul.f32 0.5, %v557
    %v559 = vsub.f32 1.5, %v558
    %v560 = vmul.f32 %v555, %v559
    %vm561 = vweird.f32 %v554
    %vm562 = vweird.f32 %v555
    %vm563 = vmor %vm561, %vm562
    %v564 = vsel %vm563, %v555, %v560
    %v565 = vsub.f32 %v280, %v549
    %v566 = vmul.f32 %v565, %v564
    %567 = vst [vmem:[#allocation13] sm:$0x3] %v566
    %v568 = vmul.f32 %v564, %v498
    %v569 = vmul.f32 %v564, %v524
    %v570 = vmul.f32 %v549, %v564
    %v571 = vld [vmem:[%s3] sm:$0x3]
    %v572 = vmul.f32 %v570, %v571
    %v574 = vperm.slane %v572, 0
    %v575 = vperm.slane %v572, 1
    %v578 = vsub.f32 %v568, %v574
    %v579 = vsub.f32 %v569, %v575
    %v580 = vsel %vm527, %v578, 0.0
    %v581 = vsel %vm527, %v579, 0.0
    %v582 = vadd.f32 %v580, %v581
    %583 = vadd.xlane.f32.xlu0 %v582
    %v584 = vpop.xlane.xlu0 %583
    %v585 = vsel %vm527, %v584, 0.0
    %v586 = vrot.slane %v585, 4
    %v587 = vadd.f32 %v585, %v586
    %v588 = vrot.slane %v587, 2
    %v589 = vadd.f32 %v587, %v588
    %v590 = vrot.slane %v589, 1
    %v591 = vadd.f32 %v589, %v590
    %v592 = vmul.f32 %v578, %v578
    %v593 = vmul.f32 %v579, %v579
    %v594 = vsel %vm527, %v592, 0.0
    %v595 = vsel %vm527, %v593, 0.0
    %v596 = vadd.f32 %v594, %v595
    %597 = vadd.xlane.f32.xlu0 %v596
    %v598 = vpop.xlane.xlu0 %597
    %v599 = vsel %vm527, %v598, 0.0
    %v600 = vrot.slane %v599, 4
    %v601 = vadd.f32 %v599, %v600
    %v602 = vrot.slane %v601, 2
    %v603 = vadd.f32 %v601, %v602
    %v604 = vrot.slane %v603, 1
    %v605 = vadd.f32 %v603, %v604
    %v606 = vmul.f32 %v591, 0.001953125
    %v607 = vmul.f32 %v605, 0.001953125
    %v608 = vmul.f32 %v606, %v606
    %v609 = vsub.f32 %v607, %v608
    %v610 = vmax.f32 %v609, 0.0
    %v611 = vadd.f32 %v610, 1e-05
    %v612 = vrsqrt.pop %v611
    %v613 = vmul.f32 %v612, %v611
    %v614 = vmul.f32 %v613, %v612
    %v615 = vmul.f32 0.5, %v614
    %v616 = vsub.f32 1.5, %v615
    %v617 = vmul.f32 %v612, %v616
    %vm618 = vweird.f32 %v611
    %vm619 = vweird.f32 %v612
    %vm620 = vmor %vm618, %vm619
    %v621 = vsel %vm620, %v612, %v617
    %v622 = vsub.f32 %v578, %v606
    %v623 = vsub.f32 %v579, %v606
    %v624 = vmul.f32 %v622, %v621
    %v625 = vmul.f32 %v623, %v621
    %v626 = vld [vmem:[#allocation8] sm:$0xff]
    %v627 = vld [vmem:[#allocation8 + $0x8] sm:$0xff]
    %v628 = vld [vmem:[#allocation8 + $0x10] sm:$0xff]
    %v629 = vld [vmem:[#allocation8 + $0x18] sm:$0xff]
    %v630 = vld [vmem:[#allocation8 + $0x20] sm:$0xff]
    %v631 = vld [vmem:[#allocation8 + $0x28] sm:$0xff]
    %v632 = vld [vmem:[#allocation8 + $0x30] sm:$0xff]
    %v633 = vld [vmem:[#allocation8 + $0x38] sm:$0xff]
    %v634 = vld [vmem:[#allocation8 + $0x40] sm:$0xff]
    %v635 = vld [vmem:[#allocation8 + $0x48] sm:$0xff]
    %v636 = vld [vmem:[#allocation8 + $0x50] sm:$0xff]
    %v637 = vld [vmem:[#allocation8 + $0x58] sm:$0xff]
    %v638 = vld [vmem:[#allocation8 + $0x60] sm:$0xff]
    %v639 = vld [vmem:[#allocation8 + $0x68] sm:$0xff]
    %v640 = vld [vmem:[#allocation8 + $0x70] sm:$0xff]
    %v641 = vld [vmem:[#allocation8 + $0x78] sm:$0xff]
    %v642 = vld [vmem:[#allocation8 + $0x80] sm:$0xff]
    %v643 = vld [vmem:[#allocation8 + $0x88] sm:$0xff]
    %v644 = vld [vmem:[#allocation8 + $0x90] sm:$0xff]
    %v645 = vld [vmem:[#allocation8 + $0x98] sm:$0xff]
    %v646 = vld [vmem:[#allocation8 + $0xa0] sm:$0xff]
    %v647 = vld [vmem:[#allocation8 + $0xa8] sm:$0xff]
    %v648 = vld [vmem:[#allocation8 + $0xb0] sm:$0xff]
    %v649 = vld [vmem:[#allocation8 + $0xb8] sm:$0xff]
    %v650 = vld [vmem:[#allocation8 + $0xc0] sm:$0xff]
    %v651 = vld [vmem:[#allocation8 + $0xc8] sm:$0xff]
    %v652 = vld [vmem:[#allocation8 + $0xd0] sm:$0xff]
    %v653 = vld [vmem:[#allocation8 + $0xd8] sm:$0xff]
    %v654 = vld [vmem:[#allocation8 + $0xe0] sm:$0xff]
    %v655 = vld [vmem:[#allocation8 + $0xe8] sm:$0xff]
    %v656 = vld [vmem:[#allocation8 + $0xf0] sm:$0xff]
    %v657 = vld [vmem:[#allocation8 + $0xf8] sm:$0xff]
    %v658 = vld [vmem:[#allocation8 + $0x100] sm:$0xff]
    %v659 = vld [vmem:[#allocation8 + $0x108] sm:$0xff]
    %v660 = vld [vmem:[#allocation8 + $0x110] sm:$0xff]
    %v661 = vld [vmem:[#allocation8 + $0x118] sm:$0xff]
    %v662 = vld [vmem:[#allocation8 + $0x120] sm:$0xff]
    %v663 = vld [vmem:[#allocation8 + $0x128] sm:$0xff]
    %v664 = vld [vmem:[#allocation8 + $0x130] sm:$0xff]
    %v665 = vld [vmem:[#allocation8 + $0x138] sm:$0xff]
    %v666 = vld [vmem:[#allocation8 + $0x140] sm:$0xff]
    %v667 = vld [vmem:[#allocation8 + $0x148] sm:$0xff]
    %v668 = vld [vmem:[#allocation8 + $0x150] sm:$0xff]
    %v669 = vld [vmem:[#allocation8 + $0x158] sm:$0xff]
    %v670 = vld [vmem:[#allocation8 + $0x160] sm:$0xff]
    %v671 = vld [vmem:[#allocation8 + $0x168] sm:$0xff]
    %v672 = vld [vmem:[#allocation8 + $0x170] sm:$0xff]
    %v673 = vld [vmem:[#allocation8 + $0x178] sm:$0xff]
    %v674 = vld [vmem:[#allocation8 + $0x180] sm:$0xff]
    %v675 = vld [vmem:[#allocation8 + $0x188] sm:$0xff]
    %v676 = vld [vmem:[#allocation8 + $0x190] sm:$0xff]
    %v677 = vld [vmem:[#allocation8 + $0x198] sm:$0xff]
    %v678 = vld [vmem:[#allocation8 + $0x1a0] sm:$0xff]
    %v679 = vld [vmem:[#allocation8 + $0x1a8] sm:$0xff]
    %v680 = vld [vmem:[#allocation8 + $0x1b0] sm:$0xff]
    %v681 = vld [vmem:[#allocation8 + $0x1b8] sm:$0xff]
    %v682 = vld [vmem:[#allocation8 + $0x1c0] sm:$0xff]
    %v683 = vld [vmem:[#allocation8 + $0x1c8] sm:$0xff]
    %v684 = vld [vmem:[#allocation8 + $0x1d0] sm:$0xff]
    %v685 = vld [vmem:[#allocation8 + $0x1d8] sm:$0xff]
    %v686 = vld [vmem:[#allocation8 + $0x1e0] sm:$0xff]
    %v687 = vld [vmem:[#allocation8 + $0x1e8] sm:$0xff]
    %v688 = vld [vmem:[#allocation8 + $0x1f0] sm:$0xff]
    %v689 = vld [vmem:[#allocation8 + $0x1f8] sm:$0xff]
    %v690 = vld [vmem:[#allocation8 + $0x200] sm:$0xff]
    %v691 = vld [vmem:[#allocation8 + $0x208] sm:$0xff]
    %v692 = vld [vmem:[#allocation8 + $0x210] sm:$0xff]
    %v693 = vld [vmem:[#allocation8 + $0x218] sm:$0xff]
    %v694 = vld [vmem:[#allocation8 + $0x220] sm:$0xff]
    %v695 = vld [vmem:[#allocation8 + $0x228] sm:$0xff]
    %v696 = vld [vmem:[#allocation8 + $0x230] sm:$0xff]
    %v697 = vld [vmem:[#allocation8 + $0x238] sm:$0xff]
    %v698 = vld [vmem:[#allocation8 + $0x240] sm:$0xff]
    %v699 = vld [vmem:[#allocation8 + $0x248] sm:$0xff]
    %v700 = vld [vmem:[#allocation8 + $0x250] sm:$0xff]
    %v701 = vld [vmem:[#allocation8 + $0x258] sm:$0xff]
    %v702 = vld [vmem:[#allocation8 + $0x260] sm:$0xff]
    %v703 = vld [vmem:[#allocation8 + $0x268] sm:$0xff]
    %v704 = vld [vmem:[#allocation8 + $0x270] sm:$0xff]
    %v705 = vld [vmem:[#allocation8 + $0x278] sm:$0xff]
    %v706 = vld [vmem:[#allocation8 + $0x280] sm:$0xff]
    %v707 = vld [vmem:[#allocation8 + $0x288] sm:$0xff]
    %v708 = vld [vmem:[#allocation8 + $0x290] sm:$0xff]
    %v709 = vld [vmem:[#allocation8 + $0x298] sm:$0xff]
    %v710 = vld [vmem:[#allocation8 + $0x2a0] sm:$0xff]
    %v711 = vld [vmem:[#allocation8 + $0x2a8] sm:$0xff]
    %v712 = vld [vmem:[#allocation8 + $0x2b0] sm:$0xff]
    %v713 = vld [vmem:[#allocation8 + $0x2b8] sm:$0xff]
    %v714 = vld [vmem:[#allocation8 + $0x2c0] sm:$0xff]
    %v715 = vld [vmem:[#allocation8 + $0x2c8] sm:$0xff]
    %v716 = vld [vmem:[#allocation8 + $0x2d0] sm:$0xff]
    %v717 = vld [vmem:[#allocation8 + $0x2d8] sm:$0xff]
    %v718 = vld [vmem:[#allocation8 + $0x2e0] sm:$0xff]
    %v719 = vld [vmem:[#allocation8 + $0x2e8] sm:$0xff]
    %v720 = vld [vmem:[#allocation8 + $0x2f0] sm:$0xff]
    %v721 = vld [vmem:[#allocation8 + $0x2f8] sm:$0xff]
    %v722 = vld [vmem:[#allocation8 + $0x300] sm:$0xff]
    %v723 = vld [vmem:[#allocation8 + $0x308] sm:$0xff]
    %v724 = vld [vmem:[#allocation8 + $0x310] sm:$0xff]
    %v725 = vld [vmem:[#allocation8 + $0x318] sm:$0xff]
    %v726 = vld [vmem:[#allocation8 + $0x320] sm:$0xff]
    %v727 = vld [vmem:[#allocation8 + $0x328] sm:$0xff]
    %v728 = vld [vmem:[#allocation8 + $0x330] sm:$0xff]
    %v729 = vld [vmem:[#allocation8 + $0x338] sm:$0xff]
    %v730 = vld [vmem:[#allocation8 + $0x340] sm:$0xff]
    %v731 = vld [vmem:[#allocation8 + $0x348] sm:$0xff]
    %v732 = vld [vmem:[#allocation8 + $0x350] sm:$0xff]
    %v733 = vld [vmem:[#allocation8 + $0x358] sm:$0xff]
    %v734 = vld [vmem:[#allocation8 + $0x360] sm:$0xff]
    %v735 = vld [vmem:[#allocation8 + $0x368] sm:$0xff]
    %v736 = vld [vmem:[#allocation8 + $0x370] sm:$0xff]
    %v737 = vld [vmem:[#allocation8 + $0x378] sm:$0xff]
    %v738 = vld [vmem:[#allocation8 + $0x380] sm:$0xff]
    %v739 = vld [vmem:[#allocation8 + $0x388] sm:$0xff]
    %v740 = vld [vmem:[#allocation8 + $0x390] sm:$0xff]
    %v741 = vld [vmem:[#allocation8 + $0x398] sm:$0xff]
    %v742 = vld [vmem:[#allocation8 + $0x3a0] sm:$0xff]
    %v743 = vld [vmem:[#allocation8 + $0x3a8] sm:$0xff]
    %v744 = vld [vmem:[#allocation8 + $0x3b0] sm:$0xff]
    %v745 = vld [vmem:[#allocation8 + $0x3b8] sm:$0xff]
    %v746 = vld [vmem:[#allocation8 + $0x3c0] sm:$0xff]
    %v747 = vld [vmem:[#allocation8 + $0x3c8] sm:$0xff]
    %v748 = vld [vmem:[#allocation8 + $0x3d0] sm:$0xff]
    %v749 = vld [vmem:[#allocation8 + $0x3d8] sm:$0xff]
    %v750 = vld [vmem:[#allocation8 + $0x3e0] sm:$0xff]
    %v751 = vld [vmem:[#allocation8 + $0x3e8] sm:$0xff]
    %v752 = vld [vmem:[#allocation8 + $0x3f0] sm:$0xff]
    %v753 = vld [vmem:[#allocation8 + $0x3f8] sm:$0xff]
    %v754 = vld [vmem:[#allocation10] sm:$0xff]
    %v755 = vld [vmem:[#allocation10 + $0x8] sm:$0xff]
    %v756 = vld [vmem:[#allocation10 + $0x10] sm:$0xff]
    %v757 = vld [vmem:[#allocation10 + $0x18] sm:$0xff]
    %v758 = vld [vmem:[#allocation10 + $0x20] sm:$0xff]
    %v759 = vld [vmem:[#allocation10 + $0x28] sm:$0xff]
    %v760 = vld [vmem:[#allocation10 + $0x30] sm:$0xff]
    %v761 = vld [vmem:[#allocation10 + $0x38] sm:$0xff]
    %v762 = vld [vmem:[#allocation10 + $0x40] sm:$0xff]
    %v763 = vld [vmem:[#allocation10 + $0x48] sm:$0xff]
    %v764 = vld [vmem:[#allocation10 + $0x50] sm:$0xff]
    %v765 = vld [vmem:[#allocation10 + $0x58] sm:$0xff]
    %v766 = vld [vmem:[#allocation10 + $0x60] sm:$0xff]
    %v767 = vld [vmem:[#allocation10 + $0x68] sm:$0xff]
    %v768 = vld [vmem:[#allocation10 + $0x70] sm:$0xff]
    %v769 = vld [vmem:[#allocation10 + $0x78] sm:$0xff]
    %v770 = vld [vmem:[#allocation10 + $0x80] sm:$0xff]
    %v771 = vld [vmem:[#allocation10 + $0x88] sm:$0xff]
    %v772 = vld [vmem:[#allocation10 + $0x90] sm:$0xff]
    %v773 = vld [vmem:[#allocation10 + $0x98] sm:$0xff]
    %v774 = vld [vmem:[#allocation10 + $0xa0] sm:$0xff]
    %v775 = vld [vmem:[#allocation10 + $0xa8] sm:$0xff]
    %v776 = vld [vmem:[#allocation10 + $0xb0] sm:$0xff]
    %v777 = vld [vmem:[#allocation10 + $0xb8] sm:$0xff]
    %v778 = vld [vmem:[#allocation10 + $0xc0] sm:$0xff]
    %v779 = vld [vmem:[#allocation10 + $0xc8] sm:$0xff]
    %v780 = vld [vmem:[#allocation10 + $0xd0] sm:$0xff]
    %v781 = vld [vmem:[#allocation10 + $0xd8] sm:$0xff]
    %v782 = vld [vmem:[#allocation10 + $0xe0] sm:$0xff]
    %v783 = vld [vmem:[#allocation10 + $0xe8] sm:$0xff]
    %v784 = vld [vmem:[#allocation10 + $0xf0] sm:$0xff]
    %v785 = vld [vmem:[#allocation10 + $0xf8] sm:$0xff]
    %v786 = vld [vmem:[#allocation10 + $0x100] sm:$0xff]
    %v787 = vld [vmem:[#allocation10 + $0x108] sm:$0xff]
    %v788 = vld [vmem:[#allocation10 + $0x110] sm:$0xff]
    %v789 = vld [vmem:[#allocation10 + $0x118] sm:$0xff]
    %v790 = vld [vmem:[#allocation10 + $0x120] sm:$0xff]
    %v791 = vld [vmem:[#allocation10 + $0x128] sm:$0xff]
    %v792 = vld [vmem:[#allocation10 + $0x130] sm:$0xff]
    %v793 = vld [vmem:[#allocation10 + $0x138] sm:$0xff]
    %v794 = vld [vmem:[#allocation10 + $0x140] sm:$0xff]
    %v795 = vld [vmem:[#allocation10 + $0x148] sm:$0xff]
    %v796 = vld [vmem:[#allocation10 + $0x150] sm:$0xff]
    %v797 = vld [vmem:[#allocation10 + $0x158] sm:$0xff]
    %v798 = vld [vmem:[#allocation10 + $0x160] sm:$0xff]
    %v799 = vld [vmem:[#allocation10 + $0x168] sm:$0xff]
    %v800 = vld [vmem:[#allocation10 + $0x170] sm:$0xff]
    %v801 = vld [vmem:[#allocation10 + $0x178] sm:$0xff]
    %v802 = vld [vmem:[#allocation10 + $0x180] sm:$0xff]
    %v803 = vld [vmem:[#allocation10 + $0x188] sm:$0xff]
    %v804 = vld [vmem:[#allocation10 + $0x190] sm:$0xff]
    %v805 = vld [vmem:[#allocation10 + $0x198] sm:$0xff]
    %v806 = vld [vmem:[#allocation10 + $0x1a0] sm:$0xff]
    %v807 = vld [vmem:[#allocation10 + $0x1a8] sm:$0xff]
    %v808 = vld [vmem:[#allocation10 + $0x1b0] sm:$0xff]
    %v809 = vld [vmem:[#allocation10 + $0x1b8] sm:$0xff]
    %v810 = vld [vmem:[#allocation10 + $0x1c0] sm:$0xff]
    %v811 = vld [vmem:[#allocation10 + $0x1c8] sm:$0xff]
    %v812 = vld [vmem:[#allocation10 + $0x1d0] sm:$0xff]
    %v813 = vld [vmem:[#allocation10 + $0x1d8] sm:$0xff]
    %v814 = vld [vmem:[#allocation10 + $0x1e0] sm:$0xff]
    %v815 = vld [vmem:[#allocation10 + $0x1e8] sm:$0xff]
    %v816 = vld [vmem:[#allocation10 + $0x1f0] sm:$0xff]
    %v817 = vld [vmem:[#allocation10 + $0x1f8] sm:$0xff]
    %v818 = vld [vmem:[#allocation10 + $0x200] sm:$0xff]
    %v819 = vld [vmem:[#allocation10 + $0x208] sm:$0xff]
    %v820 = vld [vmem:[#allocation10 + $0x210] sm:$0xff]
    %v821 = vld [vmem:[#allocation10 + $0x218] sm:$0xff]
    %v822 = vld [vmem:[#allocation10 + $0x220] sm:$0xff]
    %v823 = vld [vmem:[#allocation10 + $0x228] sm:$0xff]
    %v824 = vld [vmem:[#allocation10 + $0x230] sm:$0xff]
    %v825 = vld [vmem:[#allocation10 + $0x238] sm:$0xff]
    %v826 = vld [vmem:[#allocation10 + $0x240] sm:$0xff]
    %v827 = vld [vmem:[#allocation10 + $0x248] sm:$0xff]
    %v828 = vld [vmem:[#allocation10 + $0x250] sm:$0xff]
    %v829 = vld [vmem:[#allocation10 + $0x258] sm:$0xff]
    %v830 = vld [vmem:[#allocation10 + $0x260] sm:$0xff]
    %v831 = vld [vmem:[#allocation10 + $0x268] sm:$0xff]
    %v832 = vld [vmem:[#allocation10 + $0x270] sm:$0xff]
    %v833 = vld [vmem:[#allocation10 + $0x278] sm:$0xff]
    %v834 = vld [vmem:[#allocation10 + $0x280] sm:$0xff]
    %v835 = vld [vmem:[#allocation10 + $0x288] sm:$0xff]
    %v836 = vld [vmem:[#allocation10 + $0x290] sm:$0xff]
    %v837 = vld [vmem:[#allocation10 + $0x298] sm:$0xff]
    %v838 = vld [vmem:[#allocation10 + $0x2a0] sm:$0xff]
    %v839 = vld [vmem:[#allocation10 + $0x2a8] sm:$0xff]
    %v840 = vld [vmem:[#allocation10 + $0x2b0] sm:$0xff]
    %v841 = vld [vmem:[#allocation10 + $0x2b8] sm:$0xff]
    %v842 = vld [vmem:[#allocation10 + $0x2c0] sm:$0xff]
    %v843 = vld [vmem:[#allocation10 + $0x2c8] sm:$0xff]
    %v844 = vld [vmem:[#allocation10 + $0x2d0] sm:$0xff]
    %v845 = vld [vmem:[#allocation10 + $0x2d8] sm:$0xff]
    %v846 = vld [vmem:[#allocation10 + $0x2e0] sm:$0xff]
    %v847 = vld [vmem:[#allocation10 + $0x2e8] sm:$0xff]
    %v848 = vld [vmem:[#allocation10 + $0x2f0] sm:$0xff]
    %v849 = vld [vmem:[#allocation10 + $0x2f8] sm:$0xff]
    %v850 = vld [vmem:[#allocation10 + $0x300] sm:$0xff]
    %v851 = vld [vmem:[#allocation10 + $0x308] sm:$0xff]
    %v852 = vld [vmem:[#allocation10 + $0x310] sm:$0xff]
    %v853 = vld [vmem:[#allocation10 + $0x318] sm:$0xff]
    %v854 = vld [vmem:[#allocation10 + $0x320] sm:$0xff]
    %v855 = vld [vmem:[#allocation10 + $0x328] sm:$0xff]
    %v856 = vld [vmem:[#allocation10 + $0x330] sm:$0xff]
    %v857 = vld [vmem:[#allocation10 + $0x338] sm:$0xff]
    %v858 = vld [vmem:[#allocation10 + $0x340] sm:$0xff]
    %v859 = vld [vmem:[#allocation10 + $0x348] sm:$0xff]
    %v860 = vld [vmem:[#allocation10 + $0x350] sm:$0xff]
    %v861 = vld [vmem:[#allocation10 + $0x358] sm:$0xff]
    %v862 = vld [vmem:[#allocation10 + $0x360] sm:$0xff]
    %v863 = vld [vmem:[#allocation10 + $0x368] sm:$0xff]
    %v864 = vld [vmem:[#allocation10 + $0x370] sm:$0xff]
    %v865 = vld [vmem:[#allocation10 + $0x378] sm:$0xff]
    %v866 = vld [vmem:[#allocation10 + $0x380] sm:$0xff]
    %v867 = vld [vmem:[#allocation10 + $0x388] sm:$0xff]
    %v868 = vld [vmem:[#allocation10 + $0x390] sm:$0xff]
    %v869 = vld [vmem:[#allocation10 + $0x398] sm:$0xff]
    %v870 = vld [vmem:[#allocation10 + $0x3a0] sm:$0xff]
    %v871 = vld [vmem:[#allocation10 + $0x3a8] sm:$0xff]
    %v872 = vld [vmem:[#allocation10 + $0x3b0] sm:$0xff]
    %v873 = vld [vmem:[#allocation10 + $0x3b8] sm:$0xff]
    %v874 = vld [vmem:[#allocation10 + $0x3c0] sm:$0xff]
    %v875 = vld [vmem:[#allocation10 + $0x3c8] sm:$0xff]
    %v876 = vld [vmem:[#allocation10 + $0x3d0] sm:$0xff]
    %v877 = vld [vmem:[#allocation10 + $0x3d8] sm:$0xff]
    %v878 = vld [vmem:[#allocation10 + $0x3e0] sm:$0xff]
    %v879 = vld [vmem:[#allocation10 + $0x3e8] sm:$0xff]
    %v880 = vld [vmem:[#allocation10 + $0x3f0] sm:$0xff]
    %v881 = vld [vmem:[#allocation10 + $0x3f8] sm:$0xff]
    %v882 = vld [vmem:[#allocation11] sm:$0xff]
    %v884 = vperm.slane %v882, 0
    %v885 = vperm.slane %v882, 1
    %v886 = vperm.slane %v882, 2
    %v887 = vperm.slane %v882, 3
    %v888 = vperm.slane %v882, 4
    %v889 = vperm.slane %v882, 5
    %v890 = vperm.slane %v882, 6
    %v891 = vperm.slane %v882, 7
    %v900 = vsub.f32 0.0, %v884
    %v901 = vsub.f32 0.0, %v885
    %v902 = vsub.f32 0.0, %v886
    %v903 = vsub.f32 0.0, %v887
    %v904 = vsub.f32 0.0, %v888
    %v905 = vsub.f32 0.0, %v889
    %v906 = vsub.f32 0.0, %v890
    %v907 = vsub.f32 0.0, %v891
    %v908 = vpack.c.bf16 %v624, %v624
    %v909 = vpack.c.bf16 %v625, %v625
    %v1038 = vunpack.c.l.b16 %v626
    %v1039 = vunpack.c.h.b16 %v626
    %v1040 = vunpack.c.l.b16 %v627
    %v1041 = vunpack.c.h.b16 %v627
    %v1042 = vunpack.c.l.b16 %v628
    %v1043 = vunpack.c.h.b16 %v628
    %v1044 = vunpack.c.l.b16 %v629
    %v1045 = vunpack.c.h.b16 %v629
    %v1046 = vunpack.c.l.b16 %v630
    %v1047 = vunpack.c.h.b16 %v630
    %v1048 = vunpack.c.l.b16 %v631
    %v1049 = vunpack.c.h.b16 %v631
    %v1050 = vunpack.c.l.b16 %v632
    %v1051 = vunpack.c.h.b16 %v632
    %v1052 = vunpack.c.l.b16 %v633
    %v1053 = vunpack.c.h.b16 %v633
    %v1054 = vunpack.c.l.b16 %v634
    %v1055 = vunpack.c.h.b16 %v634
    %v1056 = vunpack.c.l.b16 %v635
    %v1057 = vunpack.c.h.b16 %v635
    %v1058 = vunpack.c.l.b16 %v636
    %v1059 = vunpack.c.h.b16 %v636
    %v1060 = vunpack.c.l.b16 %v637
    %v1061 = vunpack.c.h.b16 %v637
    %v1062 = vunpack.c.l.b16 %v638
    %v1063 = vunpack.c.h.b16 %v638
    %v1064 = vunpack.c.l.b16 %v639
    %v1065 = vunpack.c.h.b16 %v639
    %v1066 = vunpack.c.l.b16 %v640
    %v1067 = vunpack.c.h.b16 %v640
    %v1068 = vunpack.c.l.b16 %v641
    %v1069 = vunpack.c.h.b16 %v641
    %v1070 = vunpack.c.l.b16 %v642
    %v1071 = vunpack.c.h.b16 %v642
    %v1072 = vunpack.c.l.b16 %v643
    %v1073 = vunpack.c.h.b16 %v643
    %v1074 = vunpack.c.l.b16 %v644
    %v1075 = vunpack.c.h.b16 %v644
    %v1076 = vunpack.c.l.b16 %v645
    %v1077 = vunpack.c.h.b16 %v645
    %v1078 = vunpack.c.l.b16 %v646
    %v1079 = vunpack.c.h.b16 %v646
    %v1080 = vunpack.c.l.b16 %v647
    %v1081 = vunpack.c.h.b16 %v647
    %v1082 = vunpack.c.l.b16 %v648
    %v1083 = vunpack.c.h.b16 %v648
    %v1084 = vunpack.c.l.b16 %v649
    %v1085 = vunpack.c.h.b16 %v649
    %v1086 = vunpack.c.l.b16 %v650
    %v1087 = vunpack.c.h.b16 %v650
    %v1088 = vunpack.c.l.b16 %v651
    %v1089 = vunpack.c.h.b16 %v651
    %v1090 = vunpack.c.l.b16 %v652
    %v1091 = vunpack.c.h.b16 %v652
    %v1092 = vunpack.c.l.b16 %v653
    %v1093 = vunpack.c.h.b16 %v653
    %v1094 = vunpack.c.l.b16 %v654
    %v1095 = vunpack.c.h.b16 %v654
    %v1096 = vunpack.c.l.b16 %v655
    %v1097 = vunpack.c.h.b16 %v655
    %v1098 = vunpack.c.l.b16 %v656
    %v1099 = vunpack.c.h.b16 %v656
    %v1100 = vunpack.c.l.b16 %v657
    %v1101 = vunpack.c.h.b16 %v657
    %v1102 = vunpack.c.l.b16 %v658
    %v1103 = vunpack.c.h.b16 %v658
    %v1104 = vunpack.c.l.b16 %v659
    %v1105 = vunpack.c.h.b16 %v659
    %v1106 = vunpack.c.l.b16 %v660
    %v1107 = vunpack.c.h.b16 %v660
    %v1108 = vunpack.c.l.b16 %v661
    %v1109 = vunpack.c.h.b16 %v661
    %v1110 = vunpack.c.l.b16 %v662
    %v1111 = vunpack.c.h.b16 %v662
    %v1112 = vunpack.c.l.b16 %v663
    %v1113 = vunpack.c.h.b16 %v663
    %v1114 = vunpack.c.l.b16 %v664
    %v1115 = vunpack.c.h.b16 %v664
    %v1116 = vunpack.c.l.b16 %v665
    %v1117 = vunpack.c.h.b16 %v665
    %v1118 = vunpack.c.l.b16 %v666
    %v1119 = vunpack.c.h.b16 %v666
    %v1120 = vunpack.c.l.b16 %v667
    %v1121 = vunpack.c.h.b16 %v667
    %v1122 = vunpack.c.l.b16 %v668
    %v1123 = vunpack.c.h.b16 %v668
    %v1124 = vunpack.c.l.b16 %v669
    %v1125 = vunpack.c.h.b16 %v669
    %v1126 = vunpack.c.l.b16 %v670
    %v1127 = vunpack.c.h.b16 %v670
    %v1128 = vunpack.c.l.b16 %v671
    %v1129 = vunpack.c.h.b16 %v671
    %v1130 = vunpack.c.l.b16 %v672
    %v1131 = vunpack.c.h.b16 %v672
    %v1132 = vunpack.c.l.b16 %v673
    %v1133 = vunpack.c.h.b16 %v673
    %v1134 = vunpack.c.l.b16 %v674
    %v1135 = vunpack.c.h.b16 %v674
    %v1136 = vunpack.c.l.b16 %v675
    %v1137 = vunpack.c.h.b16 %v675
    %v1138 = vunpack.c.l.b16 %v676
    %v1139 = vunpack.c.h.b16 %v676
    %v1140 = vunpack.c.l.b16 %v677
    %v1141 = vunpack.c.h.b16 %v677
    %v1142 = vunpack.c.l.b16 %v678
    %v1143 = vunpack.c.h.b16 %v678
    %v1144 = vunpack.c.l.b16 %v679
    %v1145 = vunpack.c.h.b16 %v679
    %v1146 = vunpack.c.l.b16 %v680
    %v1147 = vunpack.c.h.b16 %v680
    %v1148 = vunpack.c.l.b16 %v681
    %v1149 = vunpack.c.h.b16 %v681
    %v1150 = vunpack.c.l.b16 %v682
    %v1151 = vunpack.c.h.b16 %v682
    %v1152 = vunpack.c.l.b16 %v683
    %v1153 = vunpack.c.h.b16 %v683
    %v1154 = vunpack.c.l.b16 %v684
    %v1155 = vunpack.c.h.b16 %v684
    %v1156 = vunpack.c.l.b16 %v685
    %v1157 = vunpack.c.h.b16 %v685
    %v1158 = vunpack.c.l.b16 %v686
    %v1159 = vunpack.c.h.b16 %v686
    %v1160 = vunpack.c.l.b16 %v687
    %v1161 = vunpack.c.h.b16 %v687
    %v1162 = vunpack.c.l.b16 %v688
    %v1163 = vunpack.c.h.b16 %v688
    %v1164 = vunpack.c.l.b16 %v689
    %v1165 = vunpack.c.h.b16 %v689
    %v1166 = vunpack.c.l.b16 %v690
    %v1167 = vunpack.c.h.b16 %v690
    %v1168 = vunpack.c.l.b16 %v691
    %v1169 = vunpack.c.h.b16 %v691
    %v1170 = vunpack.c.l.b16 %v692
    %v1171 = vunpack.c.h.b16 %v692
    %v1172 = vunpack.c.l.b16 %v693
    %v1173 = vunpack.c.h.b16 %v693
    %v1174 = vunpack.c.l.b16 %v694
    %v1175 = vunpack.c.h.b16 %v694
    %v1176 = vunpack.c.l.b16 %v695
    %v1177 = vunpack.c.h.b16 %v695
    %v1178 = vunpack.c.l.b16 %v696
    %v1179 = vunpack.c.h.b16 %v696
    %v1180 = vunpack.c.l.b16 %v697
    %v1181 = vunpack.c.h.b16 %v697
    %v1182 = vunpack.c.l.b16 %v698
    %v1183 = vunpack.c.h.b16 %v698
    %v1184 = vunpack.c.l.b16 %v699
    %v1185 = vunpack.c.h.b16 %v699
    %v1186 = vunpack.c.l.b16 %v700
    %v1187 = vunpack.c.h.b16 %v700
    %v1188 = vunpack.c.l.b16 %v701
    %v1189 = vunpack.c.h.b16 %v701
    %v1190 = vunpack.c.l.b16 %v702
    %v1191 = vunpack.c.h.b16 %v702
    %v1192 = vunpack.c.l.b16 %v703
    %v1193 = vunpack.c.h.b16 %v703
    %v1194 = vunpack.c.l.b16 %v704
    %v1195 = vunpack.c.h.b16 %v704
    %v1196 = vunpack.c.l.b16 %v705
    %v1197 = vunpack.c.h.b16 %v705
    %v1198 = vunpack.c.l.b16 %v706
    %v1199 = vunpack.c.h.b16 %v706
    %v1200 = vunpack.c.l.b16 %v707
    %v1201 = vunpack.c.h.b16 %v707
    %v1202 = vunpack.c.l.b16 %v708
    %v1203 = vunpack.c.h.b16 %v708
    %v1204 = vunpack.c.l.b16 %v709
    %v1205 = vunpack.c.h.b16 %v709
    %v1206 = vunpack.c.l.b16 %v710
    %v1207 = vunpack.c.h.b16 %v710
    %v1208 = vunpack.c.l.b16 %v711
    %v1209 = vunpack.c.h.b16 %v711
    %v1210 = vunpack.c.l.b16 %v712
    %v1211 = vunpack.c.h.b16 %v712
    %v1212 = vunpack.c.l.b16 %v713
    %v1213 = vunpack.c.h.b16 %v713
    %v1214 = vunpack.c.l.b16 %v714
    %v1215 = vunpack.c.h.b16 %v714
    %v1216 = vunpack.c.l.b16 %v715
    %v1217 = vunpack.c.h.b16 %v715
    %v1218 = vunpack.c.l.b16 %v716
    %v1219 = vunpack.c.h.b16 %v716
    %v1220 = vunpack.c.l.b16 %v717
    %v1221 = vunpack.c.h.b16 %v717
    %v1222 = vunpack.c.l.b16 %v718
    %v1223 = vunpack.c.h.b16 %v718
    %v1224 = vunpack.c.l.b16 %v719
    %v1225 = vunpack.c.h.b16 %v719
    %v1226 = vunpack.c.l.b16 %v720
    %v1227 = vunpack.c.h.b16 %v720
    %v1228 = vunpack.c.l.b16 %v721
    %v1229 = vunpack.c.h.b16 %v721
    %v1230 = vunpack.c.l.b16 %v722
    %v1231 = vunpack.c.h.b16 %v722
    %v1232 = vunpack.c.l.b16 %v723
    %v1233 = vunpack.c.h.b16 %v723
    %v1234 = vunpack.c.l.b16 %v724
    %v1235 = vunpack.c.h.b16 %v724
    %v1236 = vunpack.c.l.b16 %v725
    %v1237 = vunpack.c.h.b16 %v725
    %v1238 = vunpack.c.l.b16 %v726
    %v1239 = vunpack.c.h.b16 %v726
    %v1240 = vunpack.c.l.b16 %v727
    %v1241 = vunpack.c.h.b16 %v727
    %v1242 = vunpack.c.l.b16 %v728
    %v1243 = vunpack.c.h.b16 %v728
    %v1244 = vunpack.c.l.b16 %v729
    %v1245 = vunpack.c.h.b16 %v729
    %v1246 = vunpack.c.l.b16 %v730
    %v1247 = vunpack.c.h.b16 %v730
    %v1248 = vunpack.c.l.b16 %v731
    %v1249 = vunpack.c.h.b16 %v731
    %v1250 = vunpack.c.l.b16 %v732
    %v1251 = vunpack.c.h.b16 %v732
    %v1252 = vunpack.c.l.b16 %v733
    %v1253 = vunpack.c.h.b16 %v733
    %v1254 = vunpack.c.l.b16 %v734
    %v1255 = vunpack.c.h.b16 %v734
    %v1256 = vunpack.c.l.b16 %v735
    %v1257 = vunpack.c.h.b16 %v735
    %v1258 = vunpack.c.l.b16 %v736
    %v1259 = vunpack.c.h.b16 %v736
    %v1260 = vunpack.c.l.b16 %v737
    %v1261 = vunpack.c.h.b16 %v737
    %v1262 = vunpack.c.l.b16 %v738
    %v1263 = vunpack.c.h.b16 %v738
    %v1264 = vunpack.c.l.b16 %v739
    %v1265 = vunpack.c.h.b16 %v739
    %v1266 = vunpack.c.l.b16 %v740
    %v1267 = vunpack.c.h.b16 %v740
    %v1268 = vunpack.c.l.b16 %v741
    %v1269 = vunpack.c.h.b16 %v741
    %v1270 = vunpack.c.l.b16 %v742
    %v1271 = vunpack.c.h.b16 %v742
    %v1272 = vunpack.c.l.b16 %v743
    %v1273 = vunpack.c.h.b16 %v743
    %v1274 = vunpack.c.l.b16 %v744
    %v1275 = vunpack.c.h.b16 %v744
    %v1276 = vunpack.c.l.b16 %v745
    %v1277 = vunpack.c.h.b16 %v745
    %v1278 = vunpack.c.l.b16 %v746
    %v1279 = vunpack.c.h.b16 %v746
    %v1280 = vunpack.c.l.b16 %v747
    %v1281 = vunpack.c.h.b16 %v747
    %v1282 = vunpack.c.l.b16 %v748
    %v1283 = vunpack.c.h.b16 %v748
    %v1284 = vunpack.c.l.b16 %v749
    %v1285 = vunpack.c.h.b16 %v749
    %v1286 = vunpack.c.l.b16 %v750
    %v1287 = vunpack.c.h.b16 %v750
    %v1288 = vunpack.c.l.b16 %v751
    %v1289 = vunpack.c.h.b16 %v751
    %v1290 = vunpack.c.l.b16 %v752
    %v1291 = vunpack.c.h.b16 %v752
    %v1292 = vunpack.c.l.b16 %v753
    %v1293 = vunpack.c.h.b16 %v753
    %v1294 = vpack.c.b16 %v1046, %v1038
    %v1295 = vpack.c.b16 %v1047, %v1039
    %v1296 = vpack.c.b16 %v1048, %v1040
    %v1297 = vpack.c.b16 %v1049, %v1041
    %v1298 = vpack.c.b16 %v1050, %v1042
    %v1299 = vpack.c.b16 %v1051, %v1043
    %v1300 = vpack.c.b16 %v1052, %v1044
    %v1301 = vpack.c.b16 %v1053, %v1045
    %v1302 = vpack.c.b16 %v1062, %v1054
    %v1303 = vpack.c.b16 %v1063, %v1055
    %v1304 = vpack.c.b16 %v1064, %v1056
    %v1305 = vpack.c.b16 %v1065, %v1057
    %v1306 = vpack.c.b16 %v1066, %v1058
    %v1307 = vpack.c.b16 %v1067, %v1059
    %v1308 = vpack.c.b16 %v1068, %v1060
    %v1309 = vpack.c.b16 %v1069, %v1061
    %v1310 = vpack.c.b16 %v1078, %v1070
    %v1311 = vpack.c.b16 %v1079, %v1071
    %v1312 = vpack.c.b16 %v1080, %v1072
    %v1313 = vpack.c.b16 %v1081, %v1073
    %v1314 = vpack.c.b16 %v1082, %v1074
    %v1315 = vpack.c.b16 %v1083, %v1075
    %v1316 = vpack.c.b16 %v1084, %v1076
    %v1317 = vpack.c.b16 %v1085, %v1077
    %v1318 = vpack.c.b16 %v1094, %v1086
    %v1319 = vpack.c.b16 %v1095, %v1087
    %v1320 = vpack.c.b16 %v1096, %v1088
    %v1321 = vpack.c.b16 %v1097, %v1089
    %v1322 = vpack.c.b16 %v1098, %v1090
    %v1323 = vpack.c.b16 %v1099, %v1091
    %v1324 = vpack.c.b16 %v1100, %v1092
    %v1325 = vpack.c.b16 %v1101, %v1093
    %v1326 = vpack.c.b16 %v1110, %v1102
    %v1327 = vpack.c.b16 %v1111, %v1103
    %v1328 = vpack.c.b16 %v1112, %v1104
    %v1329 = vpack.c.b16 %v1113, %v1105
    %v1330 = vpack.c.b16 %v1114, %v1106
    %v1331 = vpack.c.b16 %v1115, %v1107
    %v1332 = vpack.c.b16 %v1116, %v1108
    %v1333 = vpack.c.b16 %v1117, %v1109
    %v1334 = vpack.c.b16 %v1126, %v1118
    %v1335 = vpack.c.b16 %v1127, %v1119
    %v1336 = vpack.c.b16 %v1128, %v1120
    %v1337 = vpack.c.b16 %v1129, %v1121
    %v1338 = vpack.c.b16 %v1130, %v1122
    %v1339 = vpack.c.b16 %v1131, %v1123
    %v1340 = vpack.c.b16 %v1132, %v1124
    %v1341 = vpack.c.b16 %v1133, %v1125
    %v1342 = vpack.c.b16 %v1142, %v1134
    %v1343 = vpack.c.b16 %v1143, %v1135
    %v1344 = vpack.c.b16 %v1144, %v1136
    %v1345 = vpack.c.b16 %v1145, %v1137
    %v1346 = vpack.c.b16 %v1146, %v1138
    %v1347 = vpack.c.b16 %v1147, %v1139
    %v1348 = vpack.c.b16 %v1148, %v1140
    %v1349 = vpack.c.b16 %v1149, %v1141
    %v1350 = vpack.c.b16 %v1158, %v1150
    %v1351 = vpack.c.b16 %v1159, %v1151
    %v1352 = vpack.c.b16 %v1160, %v1152
    %v1353 = vpack.c.b16 %v1161, %v1153
    %v1354 = vpack.c.b16 %v1162, %v1154
    %v1355 = vpack.c.b16 %v1163, %v1155
    %v1356 = vpack.c.b16 %v1164, %v1156
    %v1357 = vpack.c.b16 %v1165, %v1157
    %v1358 = vpack.c.b16 %v1174, %v1166
    %v1359 = vpack.c.b16 %v1175, %v1167
    %v1360 = vpack.c.b16 %v1176, %v1168
    %v1361 = vpack.c.b16 %v1177, %v1169
    %v1362 = vpack.c.b16 %v1178, %v1170
    %v1363 = vpack.c.b16 %v1179, %v1171
    %v1364 = vpack.c.b16 %v1180, %v1172
    %v1365 = vpack.c.b16 %v1181, %v1173
    %v1366 = vpack.c.b16 %v1190, %v1182
    %v1367 = vpack.c.b16 %v1191, %v1183
    %v1368 = vpack.c.b16 %v1192, %v1184
    %v1369 = vpack.c.b16 %v1193, %v1185
    %v1370 = vpack.c.b16 %v1194, %v1186
    %v1371 = vpack.c.b16 %v1195, %v1187
    %v1372 = vpack.c.b16 %v1196, %v1188
    %v1373 = vpack.c.b16 %v1197, %v1189
    %v1374 = vpack.c.b16 %v1206, %v1198
    %v1375 = vpack.c.b16 %v1207, %v1199
    %v1376 = vpack.c.b16 %v1208, %v1200
    %v1377 = vpack.c.b16 %v1209, %v1201
    %v1378 = vpack.c.b16 %v1210, %v1202
    %v1379 = vpack.c.b16 %v1211, %v1203
    %v1380 = vpack.c.b16 %v1212, %v1204
    %v1381 = vpack.c.b16 %v1213, %v1205
    %v1382 = vpack.c.b16 %v1222, %v1214
    %v1383 = vpack.c.b16 %v1223, %v1215
    %v1384 = vpack.c.b16 %v1224, %v1216
    %v1385 = vpack.c.b16 %v1225, %v1217
    %v1386 = vpack.c.b16 %v1226, %v1218
    %v1387 = vpack.c.b16 %v1227, %v1219
    %v1388 = vpack.c.b16 %v1228, %v1220
    %v1389 = vpack.c.b16 %v1229, %v1221
    %v1390 = vpack.c.b16 %v1238, %v1230
    %v1391 = vpack.c.b16 %v1239, %v1231
    %v1392 = vpack.c.b16 %v1240, %v1232
    %v1393 = vpack.c.b16 %v1241, %v1233
    %v1394 = vpack.c.b16 %v1242, %v1234
    %v1395 = vpack.c.b16 %v1243, %v1235
    %v1396 = vpack.c.b16 %v1244, %v1236
    %v1397 = vpack.c.b16 %v1245, %v1237
    %v1398 = vpack.c.b16 %v1254, %v1246
    %v1399 = vpack.c.b16 %v1255, %v1247
    %v1400 = vpack.c.b16 %v1256, %v1248
    %v1401 = vpack.c.b16 %v1257, %v1249
    %v1402 = vpack.c.b16 %v1258, %v1250
    %v1403 = vpack.c.b16 %v1259, %v1251
    %v1404 = vpack.c.b16 %v1260, %v1252
    %v1405 = vpack.c.b16 %v1261, %v1253
    %v1406 = vpack.c.b16 %v1270, %v1262
    %v1407 = vpack.c.b16 %v1271, %v1263
    %v1408 = vpack.c.b16 %v1272, %v1264
    %v1409 = vpack.c.b16 %v1273, %v1265
    %v1410 = vpack.c.b16 %v1274, %v1266
    %v1411 = vpack.c.b16 %v1275, %v1267
    %v1412 = vpack.c.b16 %v1276, %v1268
    %v1413 = vpack.c.b16 %v1277, %v1269
    %v1414 = vpack.c.b16 %v1286, %v1278
    %v1415 = vpack.c.b16 %v1287, %v1279
    %v1416 = vpack.c.b16 %v1288, %v1280
    %v1417 = vpack.c.b16 %v1289, %v1281
    %v1418 = vpack.c.b16 %v1290, %v1282
    %v1419 = vpack.c.b16 %v1291, %v1283
    %v1420 = vpack.c.b16 %v1292, %v1284
    %v1421 = vpack.c.b16 %v1293, %v1285
    %1550 = vmatpush.bf16.msra.mxu0 %v1350
    %1551 = vmatpush.bf16.msra.mxu0 %v1342
    %1552 = vmatpush.bf16.msra.mxu0 %v1334
    %1553 = vmatpush.bf16.msra.mxu0 %v1326
    %1554 = vmatpush.bf16.msra.mxu0 %v1318
    %1555 = vmatpush.bf16.msra.mxu0 %v1310
    %1556 = vmatpush.bf16.msra.mxu0 %v1302
    %1557 = vmatpush.bf16.msra.mxu0 %v1294
    %1558 = vmatmul.bf16.gmra.mxu0 %v908
    %v1559 = vpop.f32.mrf.mxu0
    %v1560 = vadd.f32 0.0, %v1559
    %v1561 = vpop.f32.mrf.mxu0
    %1562 = vdwg.mxu0
    %1563 = vmatpush.bf16.msra.mxu0 %v1414
    %1564 = vmatpush.bf16.msra.mxu0 %v1406
    %1565 = vmatpush.bf16.msra.mxu0 %v1398
    %1566 = vmatpush.bf16.msra.mxu0 %v1390
    %1567 = vmatpush.bf16.msra.mxu0 %v1382
    %1568 = vmatpush.bf16.msra.mxu0 %v1374
    %1569 = vmatpush.bf16.msra.mxu0 %v1366
    %1570 = vmatpush.bf16.msra.mxu0 %v1358
    %1571 = vmatmul.bf16.gmra.mxu0 %v909
    %v1572 = vpop.f32.mrf.mxu0
    %v1573 = vadd.f32 %v1560, %v1572
    %v1574 = vpop.f32.mrf.mxu0
    %1575 = vdwg.mxu0
    %1576 = vmatpush.bf16.msra.mxu0 %v1351
    %1577 = vmatpush.bf16.msra.mxu0 %v1343
    %1578 = vmatpush.bf16.msra.mxu0 %v1335
    %1579 = vmatpush.bf16.msra.mxu0 %v1327
    %1580 = vmatpush.bf16.msra.mxu0 %v1319
    %1581 = vmatpush.bf16.msra.mxu0 %v1311
    %1582 = vmatpush.bf16.msra.mxu0 %v1303
    %1583 = vmatpush.bf16.msra.mxu0 %v1295
    %1584 = vmatmul.bf16.gmra.mxu0 %v908
    %v1585 = vpop.f32.mrf.mxu0
    %v1586 = vadd.f32 0.0, %v1585
    %v1587 = vpop.f32.mrf.mxu0
    %1588 = vdwg.mxu0
    %1589 = vmatpush.bf16.msra.mxu0 %v1415
    %1590 = vmatpush.bf16.msra.mxu0 %v1407
    %1591 = vmatpush.bf16.msra.mxu0 %v1399
    %1592 = vmatpush.bf16.msra.mxu0 %v1391
    %1593 = vmatpush.bf16.msra.mxu0 %v1383
    %1594 = vmatpush.bf16.msra.mxu0 %v1375
    %1595 = vmatpush.bf16.msra.mxu0 %v1367
    %1596 = vmatpush.bf16.msra.mxu0 %v1359
    %1597 = vmatmul.bf16.gmra.mxu0 %v909
    %v1598 = vpop.f32.mrf.mxu0
    %v1599 = vadd.f32 %v1586, %v1598
    %v1600 = vpop.f32.mrf.mxu0
    %1601 = vdwg.mxu0
    %1602 = vmatpush.bf16.msra.mxu0 %v1352
    %1603 = vmatpush.bf16.msra.mxu0 %v1344
    %1604 = vmatpush.bf16.msra.mxu0 %v1336
    %1605 = vmatpush.bf16.msra.mxu0 %v1328
    %1606 = vmatpush.bf16.msra.mxu0 %v1320
    %1607 = vmatpush.bf16.msra.mxu0 %v1312
    %1608 = vmatpush.bf16.msra.mxu0 %v1304
    %1609 = vmatpush.bf16.msra.mxu0 %v1296
    %1610 = vmatmul.bf16.gmra.mxu0 %v908
    %v1611 = vpop.f32.mrf.mxu0
    %v1612 = vadd.f32 0.0, %v1611
    %v1613 = vpop.f32.mrf.mxu0
    %1614 = vdwg.mxu0
    %1615 = vmatpush.bf16.msra.mxu0 %v1416
    %1616 = vmatpush.bf16.msra.mxu0 %v1408
    %1617 = vmatpush.bf16.msra.mxu0 %v1400
    %1618 = vmatpush.bf16.msra.mxu0 %v1392
    %1619 = vmatpush.bf16.msra.mxu0 %v1384
    %1620 = vmatpush.bf16.msra.mxu0 %v1376
    %1621 = vmatpush.bf16.msra.mxu0 %v1368
    %1622 = vmatpush.bf16.msra.mxu0 %v1360
    %1623 = vmatmul.bf16.gmra.mxu0 %v909
    %v1624 = vpop.f32.mrf.mxu0
    %v1625 = vadd.f32 %v1612, %v1624
    %v1626 = vpop.f32.mrf.mxu0
    %1627 = vdwg.mxu0
    %1628 = vmatpush.bf16.msra.mxu0 %v1353
    %1629 = vmatpush.bf16.msra.mxu0 %v1345
    %1630 = vmatpush.bf16.msra.mxu0 %v1337
    %1631 = vmatpush.bf16.msra.mxu0 %v1329
    %1632 = vmatpush.bf16.msra.mxu0 %v1321
    %1633 = vmatpush.bf16.msra.mxu0 %v1313
    %1634 = vmatpush.bf16.msra.mxu0 %v1305
    %1635 = vmatpush.bf16.msra.mxu0 %v1297
    %1636 = vmatmul.bf16.gmra.mxu0 %v908
    %v1637 = vpop.f32.mrf.mxu0
    %v1638 = vadd.f32 0.0, %v1637
    %v1639 = vpop.f32.mrf.mxu0
    %1640 = vdwg.mxu0
    %1641 = vmatpush.bf16.msra.mxu0 %v1417
    %1642 = vmatpush.bf16.msra.mxu0 %v1409
    %1643 = vmatpush.bf16.msra.mxu0 %v1401
    %1644 = vmatpush.bf16.msra.mxu0 %v1393
    %1645 = vmatpush.bf16.msra.mxu0 %v1385
    %1646 = vmatpush.bf16.msra.mxu0 %v1377
    %1647 = vmatpush.bf16.msra.mxu0 %v1369
    %1648 = vmatpush.bf16.msra.mxu0 %v1361
    %1649 = vmatmul.bf16.gmra.mxu0 %v909
    %v1650 = vpop.f32.mrf.mxu0
    %v1651 = vadd.f32 %v1638, %v1650
    %v1652 = vpop.f32.mrf.mxu0
    %1653 = vdwg.mxu0
    %1654 = vmatpush.bf16.msra.mxu0 %v1354
    %1655 = vmatpush.bf16.msra.mxu0 %v1346
    %1656 = vmatpush.bf16.msra.mxu0 %v1338
    %1657 = vmatpush.bf16.msra.mxu0 %v1330
    %1658 = vmatpush.bf16.msra.mxu0 %v1322
    %1659 = vmatpush.bf16.msra.mxu0 %v1314
    %1660 = vmatpush.bf16.msra.mxu0 %v1306
    %1661 = vmatpush.bf16.msra.mxu0 %v1298
    %1662 = vmatmul.bf16.gmra.mxu0 %v908
    %v1663 = vpop.f32.mrf.mxu0
    %v1664 = vadd.f32 0.0, %v1663
    %v1665 = vpop.f32.mrf.mxu0
    %1666 = vdwg.mxu0
    %1667 = vmatpush.bf16.msra.mxu0 %v1418
    %1668 = vmatpush.bf16.msra.mxu0 %v1410
    %1669 = vmatpush.bf16.msra.mxu0 %v1402
    %1670 = vmatpush.bf16.msra.mxu0 %v1394
    %1671 = vmatpush.bf16.msra.mxu0 %v1386
    %1672 = vmatpush.bf16.msra.mxu0 %v1378
    %1673 = vmatpush.bf16.msra.mxu0 %v1370
    %1674 = vmatpush.bf16.msra.mxu0 %v1362
    %1675 = vmatmul.bf16.gmra.mxu0 %v909
    %v1676 = vpop.f32.mrf.mxu0
    %v1677 = vadd.f32 %v1664, %v1676
    %v1678 = vpop.f32.mrf.mxu0
    %1679 = vdwg.mxu0
    %1680 = vmatpush.bf16.msra.mxu0 %v1355
    %1681 = vmatpush.bf16.msra.mxu0 %v1347
    %1682 = vmatpush.bf16.msra.mxu0 %v1339
    %1683 = vmatpush.bf16.msra.mxu0 %v1331
    %1684 = vmatpush.bf16.msra.mxu0 %v1323
    %1685 = vmatpush.bf16.msra.mxu0 %v1315
    %1686 = vmatpush.bf16.msra.mxu0 %v1307
    %1687 = vmatpush.bf16.msra.mxu0 %v1299
    %1688 = vmatmul.bf16.gmra.mxu0 %v908
    %v1689 = vpop.f32.mrf.mxu0
    %v1690 = vadd.f32 0.0, %v1689
    %v1691 = vpop.f32.mrf.mxu0
    %1692 = vdwg.mxu0
    %1693 = vmatpush.bf16.msra.mxu0 %v1419
    %1694 = vmatpush.bf16.msra.mxu0 %v1411
    %1695 = vmatpush.bf16.msra.mxu0 %v1403
    %1696 = vmatpush.bf16.msra.mxu0 %v1395
    %1697 = vmatpush.bf16.msra.mxu0 %v1387
    %1698 = vmatpush.bf16.msra.mxu0 %v1379
    %1699 = vmatpush.bf16.msra.mxu0 %v1371
    %1700 = vmatpush.bf16.msra.mxu0 %v1363
    %1701 = vmatmul.bf16.gmra.mxu0 %v909
    %v1702 = vpop.f32.mrf.mxu0
    %v1703 = vadd.f32 %v1690, %v1702
    %v1704 = vpop.f32.mrf.mxu0
    %1705 = vdwg.mxu0
    %1706 = vmatpush.bf16.msra.mxu0 %v1356
    %1707 = vmatpush.bf16.msra.mxu0 %v1348
    %1708 = vmatpush.bf16.msra.mxu0 %v1340
    %1709 = vmatpush.bf16.msra.mxu0 %v1332
    %1710 = vmatpush.bf16.msra.mxu0 %v1324
    %1711 = vmatpush.bf16.msra.mxu0 %v1316
    %1712 = vmatpush.bf16.msra.mxu0 %v1308
    %1713 = vmatpush.bf16.msra.mxu0 %v1300
    %1714 = vmatmul.bf16.gmra.mxu0 %v908
    %v1715 = vpop.f32.mrf.mxu0
    %v1716 = vadd.f32 0.0, %v1715
    %v1717 = vpop.f32.mrf.mxu0
    %1718 = vdwg.mxu0
    %1719 = vmatpush.bf16.msra.mxu0 %v1420
    %1720 = vmatpush.bf16.msra.mxu0 %v1412
    %1721 = vmatpush.bf16.msra.mxu0 %v1404
    %1722 = vmatpush.bf16.msra.mxu0 %v1396
    %1723 = vmatpush.bf16.msra.mxu0 %v1388
    %1724 = vmatpush.bf16.msra.mxu0 %v1380
    %1725 = vmatpush.bf16.msra.mxu0 %v1372
    %1726 = vmatpush.bf16.msra.mxu0 %v1364
    %1727 = vmatmul.bf16.gmra.mxu0 %v909
    %v1728 = vpop.f32.mrf.mxu0
    %v1729 = vadd.f32 %v1716, %v1728
    %v1730 = vpop.f32.mrf.mxu0
    %1731 = vdwg.mxu0
    %1732 = vmatpush.bf16.msra.mxu0 %v1357
    %1733 = vmatpush.bf16.msra.mxu0 %v1349
    %1734 = vmatpush.bf16.msra.mxu0 %v1341
    %1735 = vmatpush.bf16.msra.mxu0 %v1333
    %1736 = vmatpush.bf16.msra.mxu0 %v1325
    %1737 = vmatpush.bf16.msra.mxu0 %v1317
    %1738 = vmatpush.bf16.msra.mxu0 %v1309
    %1739 = vmatpush.bf16.msra.mxu0 %v1301
    %1740 = vmatmul.bf16.gmra.mxu0 %v908
    %v1741 = vpop.f32.mrf.mxu0
    %v1742 = vadd.f32 0.0, %v1741
    %v1743 = vpop.f32.mrf.mxu0
    %1744 = vdwg.mxu0
    %1745 = vmatpush.bf16.msra.mxu0 %v1421
    %1746 = vmatpush.bf16.msra.mxu0 %v1413
    %1747 = vmatpush.bf16.msra.mxu0 %v1405
    %1748 = vmatpush.bf16.msra.mxu0 %v1397
    %1749 = vmatpush.bf16.msra.mxu0 %v1389
    %1750 = vmatpush.bf16.msra.mxu0 %v1381
    %1751 = vmatpush.bf16.msra.mxu0 %v1373
    %1752 = vmatpush.bf16.msra.mxu0 %v1365
    %1753 = vmatmul.bf16.gmra.mxu0 %v909
    %v1754 = vpop.f32.mrf.mxu0
    %v1755 = vadd.f32 %v1742, %v1754
    %v1756 = vpop.f32.mrf.mxu0
    %1757 = vdwg.mxu0
    %v1758 = vmax.f32 %v900, %v1573
    %v1759 = vmax.f32 %v901, %v1599
    %v1760 = vmax.f32 %v902, %v1625
    %v1761 = vmax.f32 %v903, %v1651
    %v1762 = vmax.f32 %v904, %v1677
    %v1763 = vmax.f32 %v905, %v1703
    %v1764 = vmax.f32 %v906, %v1729
    %v1765 = vmax.f32 %v907, %v1755
    %v1766 = vmin.f32 %v884, %v1758
    %v1767 = vmin.f32 %v885, %v1759
    %v1768 = vmin.f32 %v886, %v1760
    %v1769 = vmin.f32 %v887, %v1761
    %v1770 = vmin.f32 %v888, %v1762
    %v1771 = vmin.f32 %v889, %v1763
    %v1772 = vmin.f32 %v890, %v1764
    %v1773 = vmin.f32 %v891, %v1765
    %v1774 = vsub.f32 %v1573, %v1766
    %v1775 = vsub.f32 %v1599, %v1767
    %v1776 = vsub.f32 %v1625, %v1768
    %v1777 = vsub.f32 %v1651, %v1769
    %v1778 = vsub.f32 %v1677, %v1770
    %v1779 = vsub.f32 %v1703, %v1771
    %v1780 = vsub.f32 %v1729, %v1772
    %v1781 = vsub.f32 %v1755, %v1773
    %v1782 = vpack.c.bf16 %v1774, %v1774
    %v1783 = vpack.c.bf16 %v1775, %v1775
    %v1784 = vpack.c.bf16 %v1776, %v1776
    %v1785 = vpack.c.bf16 %v1777, %v1777
    %v1786 = vpack.c.bf16 %v1778, %v1778
    %v1787 = vpack.c.bf16 %v1779, %v1779
    %v1788 = vpack.c.bf16 %v1780, %v1780
    %v1789 = vpack.c.bf16 %v1781, %v1781
    %v1918 = vunpack.c.l.b16 %v754
    %v1919 = vunpack.c.h.b16 %v754
    %v1920 = vunpack.c.l.b16 %v755
    %v1921 = vunpack.c.h.b16 %v755
    %v1922 = vunpack.c.l.b16 %v756
    %v1923 = vunpack.c.h.b16 %v756
    %v1924 = vunpack.c.l.b16 %v757
    %v1925 = vunpack.c.h.b16 %v757
    %v1926 = vunpack.c.l.b16 %v758
    %v1927 = vunpack.c.h.b16 %v758
    %v1928 = vunpack.c.l.b16 %v759
    %v1929 = vunpack.c.h.b16 %v759
    %v1930 = vunpack.c.l.b16 %v760
    %v1931 = vunpack.c.h.b16 %v760
    %v1932 = vunpack.c.l.b16 %v761
    %v1933 = vunpack.c.h.b16 %v761
    %v1934 = vunpack.c.l.b16 %v762
    %v1935 = vunpack.c.h.b16 %v762
    %v1936 = vunpack.c.l.b16 %v763
    %v1937 = vunpack.c.h.b16 %v763
    %v1938 = vunpack.c.l.b16 %v764
    %v1939 = vunpack.c.h.b16 %v764
    %v1940 = vunpack.c.l.b16 %v765
    %v1941 = vunpack.c.h.b16 %v765
    %v1942 = vunpack.c.l.b16 %v766
    %v1943 = vunpack.c.h.b16 %v766
    %v1944 = vunpack.c.l.b16 %v767
    %v1945 = vunpack.c.h.b16 %v767
    %v1946 = vunpack.c.l.b16 %v768
    %v1947 = vunpack.c.h.b16 %v768
    %v1948 = vunpack.c.l.b16 %v769
    %v1949 = vunpack.c.h.b16 %v769
    %v1950 = vunpack.c.l.b16 %v770
    %v1951 = vunpack.c.h.b16 %v770
    %v1952 = vunpack.c.l.b16 %v771
    %v1953 = vunpack.c.h.b16 %v771
    %v1954 = vunpack.c.l.b16 %v772
    %v1955 = vunpack.c.h.b16 %v772
    %v1956 = vunpack.c.l.b16 %v773
    %v1957 = vunpack.c.h.b16 %v773
    %v1958 = vunpack.c.l.b16 %v774
    %v1959 = vunpack.c.h.b16 %v774
    %v1960 = vunpack.c.l.b16 %v775
    %v1961 = vunpack.c.h.b16 %v775
    %v1962 = vunpack.c.l.b16 %v776
    %v1963 = vunpack.c.h.b16 %v776
    %v1964 = vunpack.c.l.b16 %v777
    %v1965 = vunpack.c.h.b16 %v777
    %v1966 = vunpack.c.l.b16 %v778
    %v1967 = vunpack.c.h.b16 %v778
    %v1968 = vunpack.c.l.b16 %v779
    %v1969 = vunpack.c.h.b16 %v779
    %v1970 = vunpack.c.l.b16 %v780
    %v1971 = vunpack.c.h.b16 %v780
    %v1972 = vunpack.c.l.b16 %v781
    %v1973 = vunpack.c.h.b16 %v781
    %v1974 = vunpack.c.l.b16 %v782
    %v1975 = vunpack.c.h.b16 %v782
    %v1976 = vunpack.c.l.b16 %v783
    %v1977 = vunpack.c.h.b16 %v783
    %v1978 = vunpack.c.l.b16 %v784
    %v1979 = vunpack.c.h.b16 %v784
    %v1980 = vunpack.c.l.b16 %v785
    %v1981 = vunpack.c.h.b16 %v785
    %v1982 = vunpack.c.l.b16 %v786
    %v1983 = vunpack.c.h.b16 %v786
    %v1984 = vunpack.c.l.b16 %v787
    %v1985 = vunpack.c.h.b16 %v787
    %v1986 = vunpack.c.l.b16 %v788
    %v1987 = vunpack.c.h.b16 %v788
    %v1988 = vunpack.c.l.b16 %v789
    %v1989 = vunpack.c.h.b16 %v789
    %v1990 = vunpack.c.l.b16 %v790
    %v1991 = vunpack.c.h.b16 %v790
    %v1992 = vunpack.c.l.b16 %v791
    %v1993 = vunpack.c.h.b16 %v791
    %v1994 = vunpack.c.l.b16 %v792
    %v1995 = vunpack.c.h.b16 %v792
    %v1996 = vunpack.c.l.b16 %v793
    %v1997 = vunpack.c.h.b16 %v793
    %v1998 = vunpack.c.l.b16 %v794
    %v1999 = vunpack.c.h.b16 %v794
    %v2000 = vunpack.c.l.b16 %v795
    %v2001 = vunpack.c.h.b16 %v795
    %v2002 = vunpack.c.l.b16 %v796
    %v2003 = vunpack.c.h.b16 %v796
    %v2004 = vunpack.c.l.b16 %v797
    %v2005 = vunpack.c.h.b16 %v797
    %v2006 = vunpack.c.l.b16 %v798
    %v2007 = vunpack.c.h.b16 %v798
    %v2008 = vunpack.c.l.b16 %v799
    %v2009 = vunpack.c.h.b16 %v799
    %v2010 = vunpack.c.l.b16 %v800
    %v2011 = vunpack.c.h.b16 %v800
    %v2012 = vunpack.c.l.b16 %v801
    %v2013 = vunpack.c.h.b16 %v801
    %v2014 = vunpack.c.l.b16 %v802
    %v2015 = vunpack.c.h.b16 %v802
    %v2016 = vunpack.c.l.b16 %v803
    %v2017 = vunpack.c.h.b16 %v803
    %v2018 = vunpack.c.l.b16 %v804
    %v2019 = vunpack.c.h.b16 %v804
    %v2020 = vunpack.c.l.b16 %v805
    %v2021 = vunpack.c.h.b16 %v805
    %v2022 = vunpack.c.l.b16 %v806
    %v2023 = vunpack.c.h.b16 %v806
    %v2024 = vunpack.c.l.b16 %v807
    %v2025 = vunpack.c.h.b16 %v807
    %v2026 = vunpack.c.l.b16 %v808
    %v2027 = vunpack.c.h.b16 %v808
    %v2028 = vunpack.c.l.b16 %v809
    %v2029 = vunpack.c.h.b16 %v809
    %v2030 = vunpack.c.l.b16 %v810
    %v2031 = vunpack.c.h.b16 %v810
    %v2032 = vunpack.c.l.b16 %v811
    %v2033 = vunpack.c.h.b16 %v811
    %v2034 = vunpack.c.l.b16 %v812
    %v2035 = vunpack.c.h.b16 %v812
    %v2036 = vunpack.c.l.b16 %v813
    %v2037 = vunpack.c.h.b16 %v813
    %v2038 = vunpack.c.l.b16 %v814
    %v2039 = vunpack.c.h.b16 %v814
    %v2040 = vunpack.c.l.b16 %v815
    %v2041 = vunpack.c.h.b16 %v815
    %v2042 = vunpack.c.l.b16 %v816
    %v2043 = vunpack.c.h.b16 %v816
    %v2044 = vunpack.c.l.b16 %v817
    %v2045 = vunpack.c.h.b16 %v817
    %v2046 = vunpack.c.l.b16 %v818
    %v2047 = vunpack.c.h.b16 %v818
    %v2048 = vunpack.c.l.b16 %v819
    %v2049 = vunpack.c.h.b16 %v819
    %v2050 = vunpack.c.l.b16 %v820
    %v2051 = vunpack.c.h.b16 %v820
    %v2052 = vunpack.c.l.b16 %v821
    %v2053 = vunpack.c.h.b16 %v821
    %v2054 = vunpack.c.l.b16 %v822
    %v2055 = vunpack.c.h.b16 %v822
    %v2056 = vunpack.c.l.b16 %v823
    %v2057 = vunpack.c.h.b16 %v823
    %v2058 = vunpack.c.l.b16 %v824
    %v2059 = vunpack.c.h.b16 %v824
    %v2060 = vunpack.c.l.b16 %v825
    %v2061 = vunpack.c.h.b16 %v825
    %v2062 = vunpack.c.l.b16 %v826
    %v2063 = vunpack.c.h.b16 %v826
    %v2064 = vunpack.c.l.b16 %v827
    %v2065 = vunpack.c.h.b16 %v827
    %v2066 = vunpack.c.l.b16 %v828
    %v2067 = vunpack.c.h.b16 %v828
    %v2068 = vunpack.c.l.b16 %v829
    %v2069 = vunpack.c.h.b16 %v829
    %v2070 = vunpack.c.l.b16 %v830
    %v2071 = vunpack.c.h.b16 %v830
    %v2072 = vunpack.c.l.b16 %v831
    %v2073 = vunpack.c.h.b16 %v831
    %v2074 = vunpack.c.l.b16 %v832
    %v2075 = vunpack.c.h.b16 %v832
    %v2076 = vunpack.c.l.b16 %v833
    %v2077 = vunpack.c.h.b16 %v833
    %v2078 = vunpack.c.l.b16 %v834
    %v2079 = vunpack.c.h.b16 %v834
    %v2080 = vunpack.c.l.b16 %v835
    %v2081 = vunpack.c.h.b16 %v835
    %v2082 = vunpack.c.l.b16 %v836
    %v2083 = vunpack.c.h.b16 %v836
    %v2084 = vunpack.c.l.b16 %v837
    %v2085 = vunpack.c.h.b16 %v837
    %v2086 = vunpack.c.l.b16 %v838
    %v2087 = vunpack.c.h.b16 %v838
    %v2088 = vunpack.c.l.b16 %v839
    %v2089 = vunpack.c.h.b16 %v839
    %v2090 = vunpack.c.l.b16 %v840
    %v2091 = vunpack.c.h.b16 %v840
    %v2092 = vunpack.c.l.b16 %v841
    %v2093 = vunpack.c.h.b16 %v841
    %v2094 = vunpack.c.l.b16 %v842
    %v2095 = vunpack.c.h.b16 %v842
    %v2096 = vunpack.c.l.b16 %v843
    %v2097 = vunpack.c.h.b16 %v843
    %v2098 = vunpack.c.l.b16 %v844
    %v2099 = vunpack.c.h.b16 %v844
    %v2100 = vunpack.c.l.b16 %v845
    %v2101 = vunpack.c.h.b16 %v845
    %v2102 = vunpack.c.l.b16 %v846
    %v2103 = vunpack.c.h.b16 %v846
    %v2104 = vunpack.c.l.b16 %v847
    %v2105 = vunpack.c.h.b16 %v847
    %v2106 = vunpack.c.l.b16 %v848
    %v2107 = vunpack.c.h.b16 %v848
    %v2108 = vunpack.c.l.b16 %v849
    %v2109 = vunpack.c.h.b16 %v849
    %v2110 = vunpack.c.l.b16 %v850
    %v2111 = vunpack.c.h.b16 %v850
    %v2112 = vunpack.c.l.b16 %v851
    %v2113 = vunpack.c.h.b16 %v851
    %v2114 = vunpack.c.l.b16 %v852
    %v2115 = vunpack.c.h.b16 %v852
    %v2116 = vunpack.c.l.b16 %v853
    %v2117 = vunpack.c.h.b16 %v853
    %v2118 = vunpack.c.l.b16 %v854
    %v2119 = vunpack.c.h.b16 %v854
    %v2120 = vunpack.c.l.b16 %v855
    %v2121 = vunpack.c.h.b16 %v855
    %v2122 = vunpack.c.l.b16 %v856
    %v2123 = vunpack.c.h.b16 %v856
    %v2124 = vunpack.c.l.b16 %v857
    %v2125 = vunpack.c.h.b16 %v857
    %v2126 = vunpack.c.l.b16 %v858
    %v2127 = vunpack.c.h.b16 %v858
    %v2128 = vunpack.c.l.b16 %v859
    %v2129 = vunpack.c.h.b16 %v859
    %v2130 = vunpack.c.l.b16 %v860
    %v2131 = vunpack.c.h.b16 %v860
    %v2132 = vunpack.c.l.b16 %v861
    %v2133 = vunpack.c.h.b16 %v861
    %v2134 = vunpack.c.l.b16 %v862
    %v2135 = vunpack.c.h.b16 %v862
    %v2136 = vunpack.c.l.b16 %v863
    %v2137 = vunpack.c.h.b16 %v863
    %v2138 = vunpack.c.l.b16 %v864
    %v2139 = vunpack.c.h.b16 %v864
    %v2140 = vunpack.c.l.b16 %v865
    %v2141 = vunpack.c.h.b16 %v865
    %v2142 = vunpack.c.l.b16 %v866
    %v2143 = vunpack.c.h.b16 %v866
    %v2144 = vunpack.c.l.b16 %v867
    %v2145 = vunpack.c.h.b16 %v867
    %v2146 = vunpack.c.l.b16 %v868
    %v2147 = vunpack.c.h.b16 %v868
    %v2148 = vunpack.c.l.b16 %v869
    %v2149 = vunpack.c.h.b16 %v869
    %v2150 = vunpack.c.l.b16 %v870
    %v2151 = vunpack.c.h.b16 %v870
    %v2152 = vunpack.c.l.b16 %v871
    %v2153 = vunpack.c.h.b16 %v871
    %v2154 = vunpack.c.l.b16 %v872
    %v2155 = vunpack.c.h.b16 %v872
    %v2156 = vunpack.c.l.b16 %v873
    %v2157 = vunpack.c.h.b16 %v873
    %v2158 = vunpack.c.l.b16 %v874
    %v2159 = vunpack.c.h.b16 %v874
    %v2160 = vunpack.c.l.b16 %v875
    %v2161 = vunpack.c.h.b16 %v875
    %v2162 = vunpack.c.l.b16 %v876
    %v2163 = vunpack.c.h.b16 %v876
    %v2164 = vunpack.c.l.b16 %v877
    %v2165 = vunpack.c.h.b16 %v877
    %v2166 = vunpack.c.l.b16 %v878
    %v2167 = vunpack.c.h.b16 %v878
    %v2168 = vunpack.c.l.b16 %v879
    %v2169 = vunpack.c.h.b16 %v879
    %v2170 = vunpack.c.l.b16 %v880
    %v2171 = vunpack.c.h.b16 %v880
    %v2172 = vunpack.c.l.b16 %v881
    %v2173 = vunpack.c.h.b16 %v881
    %v2174 = vpack.c.b16 %v1920, %v1918
    %v2175 = vpack.c.b16 %v1921, %v1919
    %v2176 = vpack.c.b16 %v1924, %v1922
    %v2177 = vpack.c.b16 %v1925, %v1923
    %v2178 = vpack.c.b16 %v1928, %v1926
    %v2179 = vpack.c.b16 %v1929, %v1927
    %v2180 = vpack.c.b16 %v1932, %v1930
    %v2181 = vpack.c.b16 %v1933, %v1931
    %v2182 = vpack.c.b16 %v1936, %v1934
    %v2183 = vpack.c.b16 %v1937, %v1935
    %v2184 = vpack.c.b16 %v1940, %v1938
    %v2185 = vpack.c.b16 %v1941, %v1939
    %v2186 = vpack.c.b16 %v1944, %v1942
    %v2187 = vpack.c.b16 %v1945, %v1943
    %v2188 = vpack.c.b16 %v1948, %v1946
    %v2189 = vpack.c.b16 %v1949, %v1947
    %v2190 = vpack.c.b16 %v1952, %v1950
    %v2191 = vpack.c.b16 %v1953, %v1951
    %v2192 = vpack.c.b16 %v1956, %v1954
    %v2193 = vpack.c.b16 %v1957, %v1955
    %v2194 = vpack.c.b16 %v1960, %v1958
    %v2195 = vpack.c.b16 %v1961, %v1959
    %v2196 = vpack.c.b16 %v1964, %v1962
    %v2197 = vpack.c.b16 %v1965, %v1963
    %v2198 = vpack.c.b16 %v1968, %v1966
    %v2199 = vpack.c.b16 %v1969, %v1967
    %v2200 = vpack.c.b16 %v1972, %v1970
    %v2201 = vpack.c.b16 %v1973, %v1971
    %v2202 = vpack.c.b16 %v1976, %v1974
    %v2203 = vpack.c.b16 %v1977, %v1975
    %v2204 = vpack.c.b16 %v1980, %v1978
    %v2205 = vpack.c.b16 %v1981, %v1979
    %v2206 = vpack.c.b16 %v1984, %v1982
    %v2207 = vpack.c.b16 %v1985, %v1983
    %v2208 = vpack.c.b16 %v1988, %v1986
    %v2209 = vpack.c.b16 %v1989, %v1987
    %v2210 = vpack.c.b16 %v1992, %v1990
    %v2211 = vpack.c.b16 %v1993, %v1991
    %v2212 = vpack.c.b16 %v1996, %v1994
    %v2213 = vpack.c.b16 %v1997, %v1995
    %v2214 = vpack.c.b16 %v2000, %v1998
    %v2215 = vpack.c.b16 %v2001, %v1999
    %v2216 = vpack.c.b16 %v2004, %v2002
    %v2217 = vpack.c.b16 %v2005, %v2003
    %v2218 = vpack.c.b16 %v2008, %v2006
    %v2219 = vpack.c.b16 %v2009, %v2007
    %v2220 = vpack.c.b16 %v2012, %v2010
    %v2221 = vpack.c.b16 %v2013, %v2011
    %v2222 = vpack.c.b16 %v2016, %v2014
    %v2223 = vpack.c.b16 %v2017, %v2015
    %v2224 = vpack.c.b16 %v2020, %v2018
    %v2225 = vpack.c.b16 %v2021, %v2019
    %v2226 = vpack.c.b16 %v2024, %v2022
    %v2227 = vpack.c.b16 %v2025, %v2023
    %v2228 = vpack.c.b16 %v2028, %v2026
    %v2229 = vpack.c.b16 %v2029, %v2027
    %v2230 = vpack.c.b16 %v2032, %v2030
    %v2231 = vpack.c.b16 %v2033, %v2031
    %v2232 = vpack.c.b16 %v2036, %v2034
    %v2233 = vpack.c.b16 %v2037, %v2035
    %v2234 = vpack.c.b16 %v2040, %v2038
    %v2235 = vpack.c.b16 %v2041, %v2039
    %v2236 = vpack.c.b16 %v2044, %v2042
    %v2237 = vpack.c.b16 %v2045, %v2043
    %v2238 = vpack.c.b16 %v2048, %v2046
    %v2239 = vpack.c.b16 %v2049, %v2047
    %v2240 = vpack.c.b16 %v2052, %v2050
    %v2241 = vpack.c.b16 %v2053, %v2051
    %v2242 = vpack.c.b16 %v2056, %v2054
    %v2243 = vpack.c.b16 %v2057, %v2055
    %v2244 = vpack.c.b16 %v2060, %v2058
    %v2245 = vpack.c.b16 %v2061, %v2059
    %v2246 = vpack.c.b16 %v2064, %v2062
    %v2247 = vpack.c.b16 %v2065, %v2063
    %v2248 = vpack.c.b16 %v2068, %v2066
    %v2249 = vpack.c.b16 %v2069, %v2067
    %v2250 = vpack.c.b16 %v2072, %v2070
    %v2251 = vpack.c.b16 %v2073, %v2071
    %v2252 = vpack.c.b16 %v2076, %v2074
    %v2253 = vpack.c.b16 %v2077, %v2075
    %v2254 = vpack.c.b16 %v2080, %v2078
    %v2255 = vpack.c.b16 %v2081, %v2079
    %v2256 = vpack.c.b16 %v2084, %v2082
    %v2257 = vpack.c.b16 %v2085, %v2083
    %v2258 = vpack.c.b16 %v2088, %v2086
    %v2259 = vpack.c.b16 %v2089, %v2087
    %v2260 = vpack.c.b16 %v2092, %v2090
    %v2261 = vpack.c.b16 %v2093, %v2091
    %v2262 = vpack.c.b16 %v2096, %v2094
    %v2263 = vpack.c.b16 %v2097, %v2095
    %v2264 = vpack.c.b16 %v2100, %v2098
    %v2265 = vpack.c.b16 %v2101, %v2099
    %v2266 = vpack.c.b16 %v2104, %v2102
    %v2267 = vpack.c.b16 %v2105, %v2103
    %v2268 = vpack.c.b16 %v2108, %v2106
    %v2269 = vpack.c.b16 %v2109, %v2107
    %v2270 = vpack.c.b16 %v2112, %v2110
    %v2271 = vpack.c.b16 %v2113, %v2111
    %v2272 = vpack.c.b16 %v2116, %v2114
    %v2273 = vpack.c.b16 %v2117, %v2115
    %v2274 = vpack.c.b16 %v2120, %v2118
    %v2275 = vpack.c.b16 %v2121, %v2119
    %v2276 = vpack.c.b16 %v2124, %v2122
    %v2277 = vpack.c.b16 %v2125, %v2123
    %v2278 = vpack.c.b16 %v2128, %v2126
    %v2279 = vpack.c.b16 %v2129, %v2127
    %v2280 = vpack.c.b16 %v2132, %v2130
    %v2281 = vpack.c.b16 %v2133, %v2131
    %v2282 = vpack.c.b16 %v2136, %v2134
    %v2283 = vpack.c.b16 %v2137, %v2135
    %v2284 = vpack.c.b16 %v2140, %v2138
    %v2285 = vpack.c.b16 %v2141, %v2139
    %v2286 = vpack.c.b16 %v2144, %v2142
    %v2287 = vpack.c.b16 %v2145, %v2143
    %v2288 = vpack.c.b16 %v2148, %v2146
    %v2289 = vpack.c.b16 %v2149, %v2147
    %v2290 = vpack.c.b16 %v2152, %v2150
    %v2291 = vpack.c.b16 %v2153, %v2151
    %v2292 = vpack.c.b16 %v2156, %v2154
    %v2293 = vpack.c.b16 %v2157, %v2155
    %v2294 = vpack.c.b16 %v2160, %v2158
    %v2295 = vpack.c.b16 %v2161, %v2159
    %v2296 = vpack.c.b16 %v2164, %v2162
    %v2297 = vpack.c.b16 %v2165, %v2163
    %v2298 = vpack.c.b16 %v2168, %v2166
    %v2299 = vpack.c.b16 %v2169, %v2167
    %v2300 = vpack.c.b16 %v2172, %v2170
    %v2301 = vpack.c.b16 %v2173, %v2171
    %2430 = vmatpush.bf16.msra.mxu0 %v2188
    %2431 = vmatpush.bf16.msra.mxu0 %v2186
    %2432 = vmatpush.bf16.msra.mxu0 %v2184
    %2433 = vmatpush.bf16.msra.mxu0 %v2182
    %2434 = vmatpush.bf16.msra.mxu0 %v2180
    %2435 = vmatpush.bf16.msra.mxu0 %v2178
    %2436 = vmatpush.bf16.msra.mxu0 %v2176
    %2437 = vmatpush.bf16.msra.mxu0 %v2174
    %2438 = vmatmul.bf16.gmra.mxu0 %v1782
    %v2439 = vpop.f32.mrf.mxu0
    %v2440 = vadd.f32 0.0, %v2439
    %v2441 = vpop.f32.mrf.mxu0
    %2442 = vdwg.mxu0
    %2443 = vmatpush.bf16.msra.mxu0 %v2204
    %2444 = vmatpush.bf16.msra.mxu0 %v2202
    %2445 = vmatpush.bf16.msra.mxu0 %v2200
    %2446 = vmatpush.bf16.msra.mxu0 %v2198
    %2447 = vmatpush.bf16.msra.mxu0 %v2196
    %2448 = vmatpush.bf16.msra.mxu0 %v2194
    %2449 = vmatpush.bf16.msra.mxu0 %v2192
    %2450 = vmatpush.bf16.msra.mxu0 %v2190
    %2451 = vmatmul.bf16.gmra.mxu0 %v1783
    %v2452 = vpop.f32.mrf.mxu0
    %v2453 = vadd.f32 %v2440, %v2452
    %v2454 = vpop.f32.mrf.mxu0
    %2455 = vdwg.mxu0
    %2456 = vmatpush.bf16.msra.mxu0 %v2220
    %2457 = vmatpush.bf16.msra.mxu0 %v2218
    %2458 = vmatpush.bf16.msra.mxu0 %v2216
    %2459 = vmatpush.bf16.msra.mxu0 %v2214
    %2460 = vmatpush.bf16.msra.mxu0 %v2212
    %2461 = vmatpush.bf16.msra.mxu0 %v2210
    %2462 = vmatpush.bf16.msra.mxu0 %v2208
    %2463 = vmatpush.bf16.msra.mxu0 %v2206
    %2464 = vmatmul.bf16.gmra.mxu0 %v1784
    %v2465 = vpop.f32.mrf.mxu0
    %v2466 = vadd.f32 %v2453, %v2465
    %v2467 = vpop.f32.mrf.mxu0
    %2468 = vdwg.mxu0
    %2469 = vmatpush.bf16.msra.mxu0 %v2236
    %2470 = vmatpush.bf16.msra.mxu0 %v2234
    %2471 = vmatpush.bf16.msra.mxu0 %v2232
    %2472 = vmatpush.bf16.msra.mxu0 %v2230
    %2473 = vmatpush.bf16.msra.mxu0 %v2228
    %2474 = vmatpush.bf16.msra.mxu0 %v2226
    %2475 = vmatpush.bf16.msra.mxu0 %v2224
    %2476 = vmatpush.bf16.msra.mxu0 %v2222
    %2477 = vmatmul.bf16.gmra.mxu0 %v1785
    %v2478 = vpop.f32.mrf.mxu0
    %v2479 = vadd.f32 %v2466, %v2478
    %v2480 = vpop.f32.mrf.mxu0
    %2481 = vdwg.mxu0
    %2482 = vmatpush.bf16.msra.mxu0 %v2252
    %2483 = vmatpush.bf16.msra.mxu0 %v2250
    %2484 = vmatpush.bf16.msra.mxu0 %v2248
    %2485 = vmatpush.bf16.msra.mxu0 %v2246
    %2486 = vmatpush.bf16.msra.mxu0 %v2244
    %2487 = vmatpush.bf16.msra.mxu0 %v2242
    %2488 = vmatpush.bf16.msra.mxu0 %v2240
    %2489 = vmatpush.bf16.msra.mxu0 %v2238
    %2490 = vmatmul.bf16.gmra.mxu0 %v1786
    %v2491 = vpop.f32.mrf.mxu0
    %v2492 = vadd.f32 %v2479, %v2491
    %v2493 = vpop.f32.mrf.mxu0
    %2494 = vdwg.mxu0
    %2495 = vmatpush.bf16.msra.mxu0 %v2268
    %2496 = vmatpush.bf16.msra.mxu0 %v2266
    %2497 = vmatpush.bf16.msra.mxu0 %v2264
    %2498 = vmatpush.bf16.msra.mxu0 %v2262
    %2499 = vmatpush.bf16.msra.mxu0 %v2260
    %2500 = vmatpush.bf16.msra.mxu0 %v2258
    %2501 = vmatpush.bf16.msra.mxu0 %v2256
    %2502 = vmatpush.bf16.msra.mxu0 %v2254
    %2503 = vmatmul.bf16.gmra.mxu0 %v1787
    %v2504 = vpop.f32.mrf.mxu0
    %v2505 = vadd.f32 %v2492, %v2504
    %v2506 = vpop.f32.mrf.mxu0
    %2507 = vdwg.mxu0
    %2508 = vmatpush.bf16.msra.mxu0 %v2284
    %2509 = vmatpush.bf16.msra.mxu0 %v2282
    %2510 = vmatpush.bf16.msra.mxu0 %v2280
    %2511 = vmatpush.bf16.msra.mxu0 %v2278
    %2512 = vmatpush.bf16.msra.mxu0 %v2276
    %2513 = vmatpush.bf16.msra.mxu0 %v2274
    %2514 = vmatpush.bf16.msra.mxu0 %v2272
    %2515 = vmatpush.bf16.msra.mxu0 %v2270
    %2516 = vmatmul.bf16.gmra.mxu0 %v1788
    %v2517 = vpop.f32.mrf.mxu0
    %v2518 = vadd.f32 %v2505, %v2517
    %v2519 = vpop.f32.mrf.mxu0
    %2520 = vdwg.mxu0
    %2521 = vmatpush.bf16.msra.mxu0 %v2300
    %2522 = vmatpush.bf16.msra.mxu0 %v2298
    %2523 = vmatpush.bf16.msra.mxu0 %v2296
    %2524 = vmatpush.bf16.msra.mxu0 %v2294
    %2525 = vmatpush.bf16.msra.mxu0 %v2292
    %2526 = vmatpush.bf16.msra.mxu0 %v2290
    %2527 = vmatpush.bf16.msra.mxu0 %v2288
    %2528 = vmatpush.bf16.msra.mxu0 %v2286
    %2529 = vmatmul.bf16.gmra.mxu0 %v1789
    %v2530 = vpop.f32.mrf.mxu0
    %v2531 = vadd.f32 %v2518, %v2530
    %v2532 = vpop.f32.mrf.mxu0
    %2533 = vdwg.mxu0
    %2534 = vmatpush.bf16.msra.mxu0 %v2189
    %2535 = vmatpush.bf16.msra.mxu0 %v2187
    %2536 = vmatpush.bf16.msra.mxu0 %v2185
    %2537 = vmatpush.bf16.msra.mxu0 %v2183
    %2538 = vmatpush.bf16.msra.mxu0 %v2181
    %2539 = vmatpush.bf16.msra.mxu0 %v2179
    %2540 = vmatpush.bf16.msra.mxu0 %v2177
    %2541 = vmatpush.bf16.msra.mxu0 %v2175
    %2542 = vmatmul.bf16.gmra.mxu0 %v1782
    %v2543 = vpop.f32.mrf.mxu0
    %v2544 = vadd.f32 0.0, %v2543
    %v2545 = vpop.f32.mrf.mxu0
    %2546 = vdwg.mxu0
    %2547 = vmatpush.bf16.msra.mxu0 %v2205
    %2548 = vmatpush.bf16.msra.mxu0 %v2203
    %2549 = vmatpush.bf16.msra.mxu0 %v2201
    %2550 = vmatpush.bf16.msra.mxu0 %v2199
    %2551 = vmatpush.bf16.msra.mxu0 %v2197
    %2552 = vmatpush.bf16.msra.mxu0 %v2195
    %2553 = vmatpush.bf16.msra.mxu0 %v2193
    %2554 = vmatpush.bf16.msra.mxu0 %v2191
    %2555 = vmatmul.bf16.gmra.mxu0 %v1783
    %v2556 = vpop.f32.mrf.mxu0
    %v2557 = vadd.f32 %v2544, %v2556
    %v2558 = vpop.f32.mrf.mxu0
    %2559 = vdwg.mxu0
    %2560 = vmatpush.bf16.msra.mxu0 %v2221
    %2561 = vmatpush.bf16.msra.mxu0 %v2219
    %2562 = vmatpush.bf16.msra.mxu0 %v2217
    %2563 = vmatpush.bf16.msra.mxu0 %v2215
    %2564 = vmatpush.bf16.msra.mxu0 %v2213
    %2565 = vmatpush.bf16.msra.mxu0 %v2211
    %2566 = vmatpush.bf16.msra.mxu0 %v2209
    %2567 = vmatpush.bf16.msra.mxu0 %v2207
    %2568 = vmatmul.bf16.gmra.mxu0 %v1784
    %v2569 = vpop.f32.mrf.mxu0
    %v2570 = vadd.f32 %v2557, %v2569
    %v2571 = vpop.f32.mrf.mxu0
    %2572 = vdwg.mxu0
    %2573 = vmatpush.bf16.msra.mxu0 %v2237
    %2574 = vmatpush.bf16.msra.mxu0 %v2235
    %2575 = vmatpush.bf16.msra.mxu0 %v2233
    %2576 = vmatpush.bf16.msra.mxu0 %v2231
    %2577 = vmatpush.bf16.msra.mxu0 %v2229
    %2578 = vmatpush.bf16.msra.mxu0 %v2227
    %2579 = vmatpush.bf16.msra.mxu0 %v2225
    %2580 = vmatpush.bf16.msra.mxu0 %v2223
    %2581 = vmatmul.bf16.gmra.mxu0 %v1785
    %v2582 = vpop.f32.mrf.mxu0
    %v2583 = vadd.f32 %v2570, %v2582
    %v2584 = vpop.f32.mrf.mxu0
    %2585 = vdwg.mxu0
    %2586 = vmatpush.bf16.msra.mxu0 %v2253
    %2587 = vmatpush.bf16.msra.mxu0 %v2251
    %2588 = vmatpush.bf16.msra.mxu0 %v2249
    %2589 = vmatpush.bf16.msra.mxu0 %v2247
    %2590 = vmatpush.bf16.msra.mxu0 %v2245
    %2591 = vmatpush.bf16.msra.mxu0 %v2243
    %2592 = vmatpush.bf16.msra.mxu0 %v2241
    %2593 = vmatpush.bf16.msra.mxu0 %v2239
    %2594 = vmatmul.bf16.gmra.mxu0 %v1786
    %v2595 = vpop.f32.mrf.mxu0
    %v2596 = vadd.f32 %v2583, %v2595
    %v2597 = vpop.f32.mrf.mxu0
    %2598 = vdwg.mxu0
    %2599 = vmatpush.bf16.msra.mxu0 %v2269
    %2600 = vmatpush.bf16.msra.mxu0 %v2267
    %2601 = vmatpush.bf16.msra.mxu0 %v2265
    %2602 = vmatpush.bf16.msra.mxu0 %v2263
    %2603 = vmatpush.bf16.msra.mxu0 %v2261
    %2604 = vmatpush.bf16.msra.mxu0 %v2259
    %2605 = vmatpush.bf16.msra.mxu0 %v2257
    %2606 = vmatpush.bf16.msra.mxu0 %v2255
    %2607 = vmatmul.bf16.gmra.mxu0 %v1787
    %v2608 = vpop.f32.mrf.mxu0
    %v2609 = vadd.f32 %v2596, %v2608
    %v2610 = vpop.f32.mrf.mxu0
    %2611 = vdwg.mxu0
    %2612 = vmatpush.bf16.msra.mxu0 %v2285
    %2613 = vmatpush.bf16.msra.mxu0 %v2283
    %2614 = vmatpush.bf16.msra.mxu0 %v2281
    %2615 = vmatpush.bf16.msra.mxu0 %v2279
    %2616 = vmatpush.bf16.msra.mxu0 %v2277
    %2617 = vmatpush.bf16.msra.mxu0 %v2275
    %2618 = vmatpush.bf16.msra.mxu0 %v2273
    %2619 = vmatpush.bf16.msra.mxu0 %v2271
    %2620 = vmatmul.bf16.gmra.mxu0 %v1788
    %v2621 = vpop.f32.mrf.mxu0
    %v2622 = vadd.f32 %v2609, %v2621
    %v2623 = vpop.f32.mrf.mxu0
    %2624 = vdwg.mxu0
    %2625 = vmatpush.bf16.msra.mxu0 %v2301
    %2626 = vmatpush.bf16.msra.mxu0 %v2299
    %2627 = vmatpush.bf16.msra.mxu0 %v2297
    %2628 = vmatpush.bf16.msra.mxu0 %v2295
    %2629 = vmatpush.bf16.msra.mxu0 %v2293
    %2630 = vmatpush.bf16.msra.mxu0 %v2291
    %2631 = vmatpush.bf16.msra.mxu0 %v2289
    %2632 = vmatpush.bf16.msra.mxu0 %v2287
    %2633 = vmatmul.bf16.gmra.mxu0 %v1789
    %v2634 = vpop.f32.mrf.mxu0
    %v2635 = vadd.f32 %v2622, %v2634
    %v2636 = vpop.f32.mrf.mxu0
    %2637 = vdwg.mxu0
    %v2638 = vsub.f32 %v624, %v2531
    %v2639 = vsub.f32 %v625, %v2635
    %v2640 = vpack.c.bf16 %v2638, %v2638
    %v2641 = vpack.c.bf16 %v2639, %v2639
    %2642 = vmatpush.bf16.msra.mxu0 %v1350
    %2643 = vmatpush.bf16.msra.mxu0 %v1342
    %2644 = vmatpush.bf16.msra.mxu0 %v1334
    %2645 = vmatpush.bf16.msra.mxu0 %v1326
    %2646 = vmatpush.bf16.msra.mxu0 %v1318
    %2647 = vmatpush.bf16.msra.mxu0 %v1310
    %2648 = vmatpush.bf16.msra.mxu0 %v1302
    %2649 = vmatpush.bf16.msra.mxu0 %v1294
    %2650 = vmatmul.bf16.gmra.mxu0 %v2640
    %v2651 = vpop.f32.mrf.mxu0
    %v2652 = vadd.f32 0.0, %v2651
    %v2653 = vpop.f32.mrf.mxu0
    %2654 = vdwg.mxu0
    %2655 = vmatpush.bf16.msra.mxu0 %v1414
    %2656 = vmatpush.bf16.msra.mxu0 %v1406
    %2657 = vmatpush.bf16.msra.mxu0 %v1398
    %2658 = vmatpush.bf16.msra.mxu0 %v1390
    %2659 = vmatpush.bf16.msra.mxu0 %v1382
    %2660 = vmatpush.bf16.msra.mxu0 %v1374
    %2661 = vmatpush.bf16.msra.mxu0 %v1366
    %2662 = vmatpush.bf16.msra.mxu0 %v1358
    %2663 = vmatmul.bf16.gmra.mxu0 %v2641
    %v2664 = vpop.f32.mrf.mxu0
    %v2665 = vadd.f32 %v2652, %v2664
    %v2666 = vpop.f32.mrf.mxu0
    %2667 = vdwg.mxu0
    %2668 = vmatpush.bf16.msra.mxu0 %v1351
    %2669 = vmatpush.bf16.msra.mxu0 %v1343
    %2670 = vmatpush.bf16.msra.mxu0 %v1335
    %2671 = vmatpush.bf16.msra.mxu0 %v1327
    %2672 = vmatpush.bf16.msra.mxu0 %v1319
    %2673 = vmatpush.bf16.msra.mxu0 %v1311
    %2674 = vmatpush.bf16.msra.mxu0 %v1303
    %2675 = vmatpush.bf16.msra.mxu0 %v1295
    %2676 = vmatmul.bf16.gmra.mxu0 %v2640
    %v2677 = vpop.f32.mrf.mxu0
    %v2678 = vadd.f32 0.0, %v2677
    %v2679 = vpop.f32.mrf.mxu0
    %2680 = vdwg.mxu0
    %2681 = vmatpush.bf16.msra.mxu0 %v1415
    %2682 = vmatpush.bf16.msra.mxu0 %v1407
    %2683 = vmatpush.bf16.msra.mxu0 %v1399
    %2684 = vmatpush.bf16.msra.mxu0 %v1391
    %2685 = vmatpush.bf16.msra.mxu0 %v1383
    %2686 = vmatpush.bf16.msra.mxu0 %v1375
    %2687 = vmatpush.bf16.msra.mxu0 %v1367
    %2688 = vmatpush.bf16.msra.mxu0 %v1359
    %2689 = vmatmul.bf16.gmra.mxu0 %v2641
    %v2690 = vpop.f32.mrf.mxu0
    %v2691 = vadd.f32 %v2678, %v2690
    %v2692 = vpop.f32.mrf.mxu0
    %2693 = vdwg.mxu0
    %2694 = vmatpush.bf16.msra.mxu0 %v1352
    %2695 = vmatpush.bf16.msra.mxu0 %v1344
    %2696 = vmatpush.bf16.msra.mxu0 %v1336
    %2697 = vmatpush.bf16.msra.mxu0 %v1328
    %2698 = vmatpush.bf16.msra.mxu0 %v1320
    %2699 = vmatpush.bf16.msra.mxu0 %v1312
    %2700 = vmatpush.bf16.msra.mxu0 %v1304
    %2701 = vmatpush.bf16.msra.mxu0 %v1296
    %2702 = vmatmul.bf16.gmra.mxu0 %v2640
    %v2703 = vpop.f32.mrf.mxu0
    %v2704 = vadd.f32 0.0, %v2703
    %v2705 = vpop.f32.mrf.mxu0
    %2706 = vdwg.mxu0
    %2707 = vmatpush.bf16.msra.mxu0 %v1416
    %2708 = vmatpush.bf16.msra.mxu0 %v1408
    %2709 = vmatpush.bf16.msra.mxu0 %v1400
    %2710 = vmatpush.bf16.msra.mxu0 %v1392
    %2711 = vmatpush.bf16.msra.mxu0 %v1384
    %2712 = vmatpush.bf16.msra.mxu0 %v1376
    %2713 = vmatpush.bf16.msra.mxu0 %v1368
    %2714 = vmatpush.bf16.msra.mxu0 %v1360
    %2715 = vmatmul.bf16.gmra.mxu0 %v2641
    %v2716 = vpop.f32.mrf.mxu0
    %v2717 = vadd.f32 %v2704, %v2716
    %v2718 = vpop.f32.mrf.mxu0
    %2719 = vdwg.mxu0
    %2720 = vmatpush.bf16.msra.mxu0 %v1353
    %2721 = vmatpush.bf16.msra.mxu0 %v1345
    %2722 = vmatpush.bf16.msra.mxu0 %v1337
    %2723 = vmatpush.bf16.msra.mxu0 %v1329
    %2724 = vmatpush.bf16.msra.mxu0 %v1321
    %2725 = vmatpush.bf16.msra.mxu0 %v1313
    %2726 = vmatpush.bf16.msra.mxu0 %v1305
    %2727 = vmatpush.bf16.msra.mxu0 %v1297
    %2728 = vmatmul.bf16.gmra.mxu0 %v2640
    %v2729 = vpop.f32.mrf.mxu0
    %v2730 = vadd.f32 0.0, %v2729
    %v2731 = vpop.f32.mrf.mxu0
    %2732 = vdwg.mxu0
    %2733 = vmatpush.bf16.msra.mxu0 %v1417
    %2734 = vmatpush.bf16.msra.mxu0 %v1409
    %2735 = vmatpush.bf16.msra.mxu0 %v1401
    %2736 = vmatpush.bf16.msra.mxu0 %v1393
    %2737 = vmatpush.bf16.msra.mxu0 %v1385
    %2738 = vmatpush.bf16.msra.mxu0 %v1377
    %2739 = vmatpush.bf16.msra.mxu0 %v1369
    %2740 = vmatpush.bf16.msra.mxu0 %v1361
    %2741 = vmatmul.bf16.gmra.mxu0 %v2641
    %v2742 = vpop.f32.mrf.mxu0
    %v2743 = vadd.f32 %v2730, %v2742
    %v2744 = vpop.f32.mrf.mxu0
    %2745 = vdwg.mxu0
    %2746 = vmatpush.bf16.msra.mxu0 %v1354
    %2747 = vmatpush.bf16.msra.mxu0 %v1346
    %2748 = vmatpush.bf16.msra.mxu0 %v1338
    %2749 = vmatpush.bf16.msra.mxu0 %v1330
    %2750 = vmatpush.bf16.msra.mxu0 %v1322
    %2751 = vmatpush.bf16.msra.mxu0 %v1314
    %2752 = vmatpush.bf16.msra.mxu0 %v1306
    %2753 = vmatpush.bf16.msra.mxu0 %v1298
    %2754 = vmatmul.bf16.gmra.mxu0 %v2640
    %v2755 = vpop.f32.mrf.mxu0
    %v2756 = vadd.f32 0.0, %v2755
    %v2757 = vpop.f32.mrf.mxu0
    %2758 = vdwg.mxu0
    %2759 = vmatpush.bf16.msra.mxu0 %v1418
    %2760 = vmatpush.bf16.msra.mxu0 %v1410
    %2761 = vmatpush.bf16.msra.mxu0 %v1402
    %2762 = vmatpush.bf16.msra.mxu0 %v1394
    %2763 = vmatpush.bf16.msra.mxu0 %v1386
    %2764 = vmatpush.bf16.msra.mxu0 %v1378
    %2765 = vmatpush.bf16.msra.mxu0 %v1370
    %2766 = vmatpush.bf16.msra.mxu0 %v1362
    %2767 = vmatmul.bf16.gmra.mxu0 %v2641
    %v2768 = vpop.f32.mrf.mxu0
    %v2769 = vadd.f32 %v2756, %v2768
    %v2770 = vpop.f32.mrf.mxu0
    %2771 = vdwg.mxu0
    %2772 = vmatpush.bf16.msra.mxu0 %v1355
    %2773 = vmatpush.bf16.msra.mxu0 %v1347
    %2774 = vmatpush.bf16.msra.mxu0 %v1339
    %2775 = vmatpush.bf16.msra.mxu0 %v1331
    %2776 = vmatpush.bf16.msra.mxu0 %v1323
    %2777 = vmatpush.bf16.msra.mxu0 %v1315
    %2778 = vmatpush.bf16.msra.mxu0 %v1307
    %2779 = vmatpush.bf16.msra.mxu0 %v1299
    %2780 = vmatmul.bf16.gmra.mxu0 %v2640
    %v2781 = vpop.f32.mrf.mxu0
    %v2782 = vadd.f32 0.0, %v2781
    %v2783 = vpop.f32.mrf.mxu0
    %2784 = vdwg.mxu0
    %2785 = vmatpush.bf16.msra.mxu0 %v1419
    %2786 = vmatpush.bf16.msra.mxu0 %v1411
    %2787 = vmatpush.bf16.msra.mxu0 %v1403
    %2788 = vmatpush.bf16.msra.mxu0 %v1395
    %2789 = vmatpush.bf16.msra.mxu0 %v1387
    %2790 = vmatpush.bf16.msra.mxu0 %v1379
    %2791 = vmatpush.bf16.msra.mxu0 %v1371
    %2792 = vmatpush.bf16.msra.mxu0 %v1363
    %2793 = vmatmul.bf16.gmra.mxu0 %v2641
    %v2794 = vpop.f32.mrf.mxu0
    %v2795 = vadd.f32 %v2782, %v2794
    %v2796 = vpop.f32.mrf.mxu0
    %2797 = vdwg.mxu0
    %2798 = vmatpush.bf16.msra.mxu0 %v1356
    %2799 = vmatpush.bf16.msra.mxu0 %v1348
    %2800 = vmatpush.bf16.msra.mxu0 %v1340
    %2801 = vmatpush.bf16.msra.mxu0 %v1332
    %2802 = vmatpush.bf16.msra.mxu0 %v1324
    %2803 = vmatpush.bf16.msra.mxu0 %v1316
    %2804 = vmatpush.bf16.msra.mxu0 %v1308
    %2805 = vmatpush.bf16.msra.mxu0 %v1300
    %2806 = vmatmul.bf16.gmra.mxu0 %v2640
    %v2807 = vpop.f32.mrf.mxu0
    %v2808 = vadd.f32 0.0, %v2807
    %v2809 = vpop.f32.mrf.mxu0
    %2810 = vdwg.mxu0
    %2811 = vmatpush.bf16.msra.mxu0 %v1420
    %2812 = vmatpush.bf16.msra.mxu0 %v1412
    %2813 = vmatpush.bf16.msra.mxu0 %v1404
    %2814 = vmatpush.bf16.msra.mxu0 %v1396
    %2815 = vmatpush.bf16.msra.mxu0 %v1388
    %2816 = vmatpush.bf16.msra.mxu0 %v1380
    %2817 = vmatpush.bf16.msra.mxu0 %v1372
    %2818 = vmatpush.bf16.msra.mxu0 %v1364
    %2819 = vmatmul.bf16.gmra.mxu0 %v2641
    %v2820 = vpop.f32.mrf.mxu0
    %v2821 = vadd.f32 %v2808, %v2820
    %v2822 = vpop.f32.mrf.mxu0
    %2823 = vdwg.mxu0
    %2824 = vmatpush.bf16.msra.mxu0 %v1357
    %2825 = vmatpush.bf16.msra.mxu0 %v1349
    %2826 = vmatpush.bf16.msra.mxu0 %v1341
    %2827 = vmatpush.bf16.msra.mxu0 %v1333
    %2828 = vmatpush.bf16.msra.mxu0 %v1325
    %2829 = vmatpush.bf16.msra.mxu0 %v1317
    %2830 = vmatpush.bf16.msra.mxu0 %v1309
    %2831 = vmatpush.bf16.msra.mxu0 %v1301
    %2832 = vmatmul.bf16.gmra.mxu0 %v2640
    %v2833 = vpop.f32.mrf.mxu0
    %v2834 = vadd.f32 0.0, %v2833
    %v2835 = vpop.f32.mrf.mxu0
    %2836 = vdwg.mxu0
    %2837 = vmatpush.bf16.msra.mxu0 %v1421
    %2838 = vmatpush.bf16.msra.mxu0 %v1413
    %2839 = vmatpush.bf16.msra.mxu0 %v1405
    %2840 = vmatpush.bf16.msra.mxu0 %v1397
    %2841 = vmatpush.bf16.msra.mxu0 %v1389
    %2842 = vmatpush.bf16.msra.mxu0 %v1381
    %2843 = vmatpush.bf16.msra.mxu0 %v1373
    %2844 = vmatpush.bf16.msra.mxu0 %v1365
    %2845 = vmatmul.bf16.gmra.mxu0 %v2641
    %v2846 = vpop.f32.mrf.mxu0
    %v2847 = vadd.f32 %v2834, %v2846
    %v2848 = vpop.f32.mrf.mxu0
    %2849 = vdwg.mxu0
    %v2850 = vadd.f32 %v1774, %v2665
    %v2851 = vadd.f32 %v1775, %v2691
    %v2852 = vadd.f32 %v1776, %v2717
    %v2853 = vadd.f32 %v1777, %v2743
    %v2854 = vadd.f32 %v1778, %v2769
    %v2855 = vadd.f32 %v1779, %v2795
    %v2856 = vadd.f32 %v1780, %v2821
    %v2857 = vadd.f32 %v1781, %v2847
    %v2858 = vmax.f32 %v900, %v2850
    %v2859 = vmax.f32 %v901, %v2851
    %v2860 = vmax.f32 %v902, %v2852
    %v2861 = vmax.f32 %v903, %v2853
    %v2862 = vmax.f32 %v904, %v2854
    %v2863 = vmax.f32 %v905, %v2855
    %v2864 = vmax.f32 %v906, %v2856
    %v2865 = vmax.f32 %v907, %v2857
    %v2866 = vmin.f32 %v884, %v2858
    %v2867 = vmin.f32 %v885, %v2859
    %v2868 = vmin.f32 %v886, %v2860
    %v2869 = vmin.f32 %v887, %v2861
    %v2870 = vmin.f32 %v888, %v2862
    %v2871 = vmin.f32 %v889, %v2863
    %v2872 = vmin.f32 %v890, %v2864
    %v2873 = vmin.f32 %v891, %v2865
    %v2874 = vsub.f32 %v2850, %v2866
    %v2875 = vsub.f32 %v2851, %v2867
    %v2876 = vsub.f32 %v2852, %v2868
    %v2877 = vsub.f32 %v2853, %v2869
    %v2878 = vsub.f32 %v2854, %v2870
    %v2879 = vsub.f32 %v2855, %v2871
    %v2880 = vsub.f32 %v2856, %v2872
    %v2881 = vsub.f32 %v2857, %v2873
    %v2882 = vpack.c.bf16 %v2874, %v2874
    %v2883 = vpack.c.bf16 %v2875, %v2875
    %v2884 = vpack.c.bf16 %v2876, %v2876
    %v2885 = vpack.c.bf16 %v2877, %v2877
    %v2886 = vpack.c.bf16 %v2878, %v2878
    %v2887 = vpack.c.bf16 %v2879, %v2879
    %v2888 = vpack.c.bf16 %v2880, %v2880
    %v2889 = vpack.c.bf16 %v2881, %v2881
    %2890 = vmatpush.bf16.msra.mxu0 %v2188
    %2891 = vmatpush.bf16.msra.mxu0 %v2186
    %2892 = vmatpush.bf16.msra.mxu0 %v2184
    %2893 = vmatpush.bf16.msra.mxu0 %v2182
    %2894 = vmatpush.bf16.msra.mxu0 %v2180
    %2895 = vmatpush.bf16.msra.mxu0 %v2178
    %2896 = vmatpush.bf16.msra.mxu0 %v2176
    %2897 = vmatpush.bf16.msra.mxu0 %v2174
    %2898 = vmatmul.bf16.gmra.mxu0 %v2882
    %v2899 = vpop.f32.mrf.mxu0
    %v2900 = vadd.f32 0.0, %v2899
    %v2901 = vpop.f32.mrf.mxu0
    %2902 = vdwg.mxu0
    %2903 = vmatpush.bf16.msra.mxu0 %v2204
    %2904 = vmatpush.bf16.msra.mxu0 %v2202
    %2905 = vmatpush.bf16.msra.mxu0 %v2200
    %2906 = vmatpush.bf16.msra.mxu0 %v2198
    %2907 = vmatpush.bf16.msra.mxu0 %v2196
    %2908 = vmatpush.bf16.msra.mxu0 %v2194
    %2909 = vmatpush.bf16.msra.mxu0 %v2192
    %2910 = vmatpush.bf16.msra.mxu0 %v2190
    %2911 = vmatmul.bf16.gmra.mxu0 %v2883
    %v2912 = vpop.f32.mrf.mxu0
    %v2913 = vadd.f32 %v2900, %v2912
    %v2914 = vpop.f32.mrf.mxu0
    %2915 = vdwg.mxu0
    %2916 = vmatpush.bf16.msra.mxu0 %v2220
    %2917 = vmatpush.bf16.msra.mxu0 %v2218
    %2918 = vmatpush.bf16.msra.mxu0 %v2216
    %2919 = vmatpush.bf16.msra.mxu0 %v2214
    %2920 = vmatpush.bf16.msra.mxu0 %v2212
    %2921 = vmatpush.bf16.msra.mxu0 %v2210
    %2922 = vmatpush.bf16.msra.mxu0 %v2208
    %2923 = vmatpush.bf16.msra.mxu0 %v2206
    %2924 = vmatmul.bf16.gmra.mxu0 %v2884
    %v2925 = vpop.f32.mrf.mxu0
    %v2926 = vadd.f32 %v2913, %v2925
    %v2927 = vpop.f32.mrf.mxu0
    %2928 = vdwg.mxu0
    %2929 = vmatpush.bf16.msra.mxu0 %v2236
    %2930 = vmatpush.bf16.msra.mxu0 %v2234
    %2931 = vmatpush.bf16.msra.mxu0 %v2232
    %2932 = vmatpush.bf16.msra.mxu0 %v2230
    %2933 = vmatpush.bf16.msra.mxu0 %v2228
    %2934 = vmatpush.bf16.msra.mxu0 %v2226
    %2935 = vmatpush.bf16.msra.mxu0 %v2224
    %2936 = vmatpush.bf16.msra.mxu0 %v2222
    %2937 = vmatmul.bf16.gmra.mxu0 %v2885
    %v2938 = vpop.f32.mrf.mxu0
    %v2939 = vadd.f32 %v2926, %v2938
    %v2940 = vpop.f32.mrf.mxu0
    %2941 = vdwg.mxu0
    %2942 = vmatpush.bf16.msra.mxu0 %v2252
    %2943 = vmatpush.bf16.msra.mxu0 %v2250
    %2944 = vmatpush.bf16.msra.mxu0 %v2248
    %2945 = vmatpush.bf16.msra.mxu0 %v2246
    %2946 = vmatpush.bf16.msra.mxu0 %v2244
    %2947 = vmatpush.bf16.msra.mxu0 %v2242
    %2948 = vmatpush.bf16.msra.mxu0 %v2240
    %2949 = vmatpush.bf16.msra.mxu0 %v2238
    %2950 = vmatmul.bf16.gmra.mxu0 %v2886
    %v2951 = vpop.f32.mrf.mxu0
    %v2952 = vadd.f32 %v2939, %v2951
    %v2953 = vpop.f32.mrf.mxu0
    %2954 = vdwg.mxu0
    %2955 = vmatpush.bf16.msra.mxu0 %v2268
    %2956 = vmatpush.bf16.msra.mxu0 %v2266
    %2957 = vmatpush.bf16.msra.mxu0 %v2264
    %2958 = vmatpush.bf16.msra.mxu0 %v2262
    %2959 = vmatpush.bf16.msra.mxu0 %v2260
    %2960 = vmatpush.bf16.msra.mxu0 %v2258
    %2961 = vmatpush.bf16.msra.mxu0 %v2256
    %2962 = vmatpush.bf16.msra.mxu0 %v2254
    %2963 = vmatmul.bf16.gmra.mxu0 %v2887
    %v2964 = vpop.f32.mrf.mxu0
    %v2965 = vadd.f32 %v2952, %v2964
    %v2966 = vpop.f32.mrf.mxu0
    %2967 = vdwg.mxu0
    %2968 = vmatpush.bf16.msra.mxu0 %v2284
    %2969 = vmatpush.bf16.msra.mxu0 %v2282
    %2970 = vmatpush.bf16.msra.mxu0 %v2280
    %2971 = vmatpush.bf16.msra.mxu0 %v2278
    %2972 = vmatpush.bf16.msra.mxu0 %v2276
    %2973 = vmatpush.bf16.msra.mxu0 %v2274
    %2974 = vmatpush.bf16.msra.mxu0 %v2272
    %2975 = vmatpush.bf16.msra.mxu0 %v2270
    %2976 = vmatmul.bf16.gmra.mxu0 %v2888
    %v2977 = vpop.f32.mrf.mxu0
    %v2978 = vadd.f32 %v2965, %v2977
    %v2979 = vpop.f32.mrf.mxu0
    %2980 = vdwg.mxu0
    %2981 = vmatpush.bf16.msra.mxu0 %v2300
    %2982 = vmatpush.bf16.msra.mxu0 %v2298
    %2983 = vmatpush.bf16.msra.mxu0 %v2296
    %2984 = vmatpush.bf16.msra.mxu0 %v2294
    %2985 = vmatpush.bf16.msra.mxu0 %v2292
    %2986 = vmatpush.bf16.msra.mxu0 %v2290
    %2987 = vmatpush.bf16.msra.mxu0 %v2288
    %2988 = vmatpush.bf16.msra.mxu0 %v2286
    %2989 = vmatmul.bf16.gmra.mxu0 %v2889
    %v2990 = vpop.f32.mrf.mxu0
    %v2991 = vadd.f32 %v2978, %v2990
    %v2992 = vpop.f32.mrf.mxu0
    %2993 = vdwg.mxu0
    %2994 = vmatpush.bf16.msra.mxu0 %v2189
    %2995 = vmatpush.bf16.msra.mxu0 %v2187
    %2996 = vmatpush.bf16.msra.mxu0 %v2185
    %2997 = vmatpush.bf16.msra.mxu0 %v2183
    %2998 = vmatpush.bf16.msra.mxu0 %v2181
    %2999 = vmatpush.bf16.msra.mxu0 %v2179
    %3000 = vmatpush.bf16.msra.mxu0 %v2177
    %3001 = vmatpush.bf16.msra.mxu0 %v2175
    %3002 = vmatmul.bf16.gmra.mxu0 %v2882
    %v3003 = vpop.f32.mrf.mxu0
    %v3004 = vadd.f32 0.0, %v3003
    %v3005 = vpop.f32.mrf.mxu0
    %3006 = vdwg.mxu0
    %3007 = vmatpush.bf16.msra.mxu0 %v2205
    %3008 = vmatpush.bf16.msra.mxu0 %v2203
    %3009 = vmatpush.bf16.msra.mxu0 %v2201
    %3010 = vmatpush.bf16.msra.mxu0 %v2199
    %3011 = vmatpush.bf16.msra.mxu0 %v2197
    %3012 = vmatpush.bf16.msra.mxu0 %v2195
    %3013 = vmatpush.bf16.msra.mxu0 %v2193
    %3014 = vmatpush.bf16.msra.mxu0 %v2191
    %3015 = vmatmul.bf16.gmra.mxu0 %v2883
    %v3016 = vpop.f32.mrf.mxu0
    %v3017 = vadd.f32 %v3004, %v3016
    %v3018 = vpop.f32.mrf.mxu0
    %3019 = vdwg.mxu0
    %3020 = vmatpush.bf16.msra.mxu0 %v2221
    %3021 = vmatpush.bf16.msra.mxu0 %v2219
    %3022 = vmatpush.bf16.msra.mxu0 %v2217
    %3023 = vmatpush.bf16.msra.mxu0 %v2215
    %3024 = vmatpush.bf16.msra.mxu0 %v2213
    %3025 = vmatpush.bf16.msra.mxu0 %v2211
    %3026 = vmatpush.bf16.msra.mxu0 %v2209
    %3027 = vmatpush.bf16.msra.mxu0 %v2207
    %3028 = vmatmul.bf16.gmra.mxu0 %v2884
    %v3029 = vpop.f32.mrf.mxu0
    %v3030 = vadd.f32 %v3017, %v3029
    %v3031 = vpop.f32.mrf.mxu0
    %3032 = vdwg.mxu0
    %3033 = vmatpush.bf16.msra.mxu0 %v2237
    %3034 = vmatpush.bf16.msra.mxu0 %v2235
    %3035 = vmatpush.bf16.msra.mxu0 %v2233
    %3036 = vmatpush.bf16.msra.mxu0 %v2231
    %3037 = vmatpush.bf16.msra.mxu0 %v2229
    %3038 = vmatpush.bf16.msra.mxu0 %v2227
    %3039 = vmatpush.bf16.msra.mxu0 %v2225
    %3040 = vmatpush.bf16.msra.mxu0 %v2223
    %3041 = vmatmul.bf16.gmra.mxu0 %v2885
    %v3042 = vpop.f32.mrf.mxu0
    %v3043 = vadd.f32 %v3030, %v3042
    %v3044 = vpop.f32.mrf.mxu0
    %3045 = vdwg.mxu0
    %3046 = vmatpush.bf16.msra.mxu0 %v2253
    %3047 = vmatpush.bf16.msra.mxu0 %v2251
    %3048 = vmatpush.bf16.msra.mxu0 %v2249
    %3049 = vmatpush.bf16.msra.mxu0 %v2247
    %3050 = vmatpush.bf16.msra.mxu0 %v2245
    %3051 = vmatpush.bf16.msra.mxu0 %v2243
    %3052 = vmatpush.bf16.msra.mxu0 %v2241
    %3053 = vmatpush.bf16.msra.mxu0 %v2239
    %3054 = vmatmul.bf16.gmra.mxu0 %v2886
    %v3055 = vpop.f32.mrf.mxu0
    %v3056 = vadd.f32 %v3043, %v3055
    %v3057 = vpop.f32.mrf.mxu0
    %3058 = vdwg.mxu0
    %3059 = vmatpush.bf16.msra.mxu0 %v2269
    %3060 = vmatpush.bf16.msra.mxu0 %v2267
    %3061 = vmatpush.bf16.msra.mxu0 %v2265
    %3062 = vmatpush.bf16.msra.mxu0 %v2263
    %3063 = vmatpush.bf16.msra.mxu0 %v2261
    %3064 = vmatpush.bf16.msra.mxu0 %v2259
    %3065 = vmatpush.bf16.msra.mxu0 %v2257
    %3066 = vmatpush.bf16.msra.mxu0 %v2255
    %3067 = vmatmul.bf16.gmra.mxu0 %v2887
    %v3068 = vpop.f32.mrf.mxu0
    %v3069 = vadd.f32 %v3056, %v3068
    %v3070 = vpop.f32.mrf.mxu0
    %3071 = vdwg.mxu0
    %3072 = vmatpush.bf16.msra.mxu0 %v2285
    %3073 = vmatpush.bf16.msra.mxu0 %v2283
    %3074 = vmatpush.bf16.msra.mxu0 %v2281
    %3075 = vmatpush.bf16.msra.mxu0 %v2279
    %3076 = vmatpush.bf16.msra.mxu0 %v2277
    %3077 = vmatpush.bf16.msra.mxu0 %v2275
    %3078 = vmatpush.bf16.msra.mxu0 %v2273
    %3079 = vmatpush.bf16.msra.mxu0 %v2271
    %3080 = vmatmul.bf16.gmra.mxu0 %v2888
    %v3081 = vpop.f32.mrf.mxu0
    %v3082 = vadd.f32 %v3069, %v3081
    %v3083 = vpop.f32.mrf.mxu0
    %3084 = vdwg.mxu0
    %3085 = vmatpush.bf16.msra.mxu0 %v2301
    %3086 = vmatpush.bf16.msra.mxu0 %v2299
    %3087 = vmatpush.bf16.msra.mxu0 %v2297
    %3088 = vmatpush.bf16.msra.mxu0 %v2295
    %3089 = vmatpush.bf16.msra.mxu0 %v2293
    %3090 = vmatpush.bf16.msra.mxu0 %v2291
    %3091 = vmatpush.bf16.msra.mxu0 %v2289
    %3092 = vmatpush.bf16.msra.mxu0 %v2287
    %3093 = vmatmul.bf16.gmra.mxu0 %v2889
    %v3094 = vpop.f32.mrf.mxu0
    %v3095 = vadd.f32 %v3082, %v3094
    %v3096 = vpop.f32.mrf.mxu0
    %3097 = vdwg.mxu0
    %v3100 = vrot.slane %v3095, 6
    %v3101 = vsel %vm527, %v2991, %v3100
    %3103 = vst [vmem:[#allocation14] sm:$0xf] %v3101
    // Predicated region
    $region54: #{tpu_custom_call.1} parent=1 // pred_check
      _
    $region55: #{tpu_custom_call.1} parent=1 // pred_check_branch
      %3105 = sbr.rel (0) target = $region57
    $region56: #{tpu_custom_call.1} parent=1 // pred_region
      %3107 = vsyncadd [#allocation4], 0
      %s3109 = sshll.u32 [#allocation13], 4
      %s3110 = int_to_ptr.vmem [resolvable:$true] %s3109
      %s3111 = sshll.u32 %s7, 4
      %s3112 = int_to_ptr.hbm [resolvable:$true] %s3111
      %3114 = dma.vmem_to_hbm [thread:$0]  %s3110, 32, %s3112, [#allocation4]
    $region57: #{tpu_custom_call.1} parent=1 // pred_fallthru
      _
    // Predicated region
    $region58: #{tpu_custom_call.1} parent=1 // pred_check
      _
    $region59: #{tpu_custom_call.1} parent=1 // pred_check_branch
      %3116 = sbr.rel (0) target = $region61
    $region60: #{tpu_custom_call.1} parent=1 // pred_region
      %3118 = vsyncadd [#allocation15], 0
      %s3120 = sshll.u32 [#allocation14], 4
      %s3121 = int_to_ptr.vmem [resolvable:$true] %s3120
      %s3122 = sshll.u32 %s8, 4
      %s3123 = int_to_ptr.hbm [resolvable:$true] %s3122
      %3125 = dma.vmem_to_hbm [thread:$0]  %s3121, 64, %s3123, [#allocation15]
    $region61: #{tpu_custom_call.1} parent=1 // pred_fallthru
      _
    // Predicated region
    $region62: #{tpu_custom_call.1} parent=1 // pred_check
      _
    $region63: #{tpu_custom_call.1} parent=1 // pred_check_branch
      %3127 = sbr.rel (0) target = $region65
    $region64: #{tpu_custom_call.1} parent=1 // pred_region
      %3129 = dma.done [#allocation4], 32
    $region65: #{tpu_custom_call.1} parent=1 // pred_fallthru
      _
    // Predicated region
    $region66: #{tpu_custom_call.1} parent=1 // pred_check
      _
    $region67: #{tpu_custom_call.1} parent=1 // pred_check_branch
      %3131 = sbr.rel (0) target = $region69
    $region68: #{tpu_custom_call.1} parent=1 // pred_region
      %3133 = dma.done [#allocation15], 64
    $region69: #{tpu_custom_call.1} parent=1 // pred_fallthru
      _
    %3134 = vsyncpa [#allocation3], 1
    %3135 = vsyncpa [#allocation6], 1
    %3136 = vsyncpa [#allocation9], 1
    %3137 = vsyncpa [#allocation12], 1
    %3138 = vsyncpa [#allocation4], 1
    %3139 = vsyncpa [#allocation15], 1

</llo_original>
